<compile_context>
chip_gen: v5e
topology: v5e:2x2
jax: 0.10.0
libtpu: 0.0.40
codegen_flags: <defaults>
</compile_context>

<pallas_src>
import functools

import jax
import jax.numpy as jnp
import numpy as np
from jax import lax
from jax.experimental import pallas as pl
from jax.experimental.pallas import tpu as pltpu


def _or_rnn_kernel(*refs, ws, out_size, layers, hidden_size):
    # refs layout:
    #   0: full_proj  (ws, B, H)      traj[:, s, :] @ W_ih[0] + b_ih[0] + b_hh[0]
    #   1: meas_proj  (T, ws*B, H)    traj[:, t, :out] @ W_ih[0][:out] + biases,
    #                                 tiled ws times along the row (slot) axis
    #   2: init_state (B, out)        traj[:, ws-1, out:]
    #   3: W_hh0      (H, H)
    #   4: W0cat      (out+H, H)      [W_ih[0][out:, :] ; W_hh[0]]
    #   5 .. 5+L-2            : Wcat[l] (2H, H) = [W_ih[l] ; W_hh[l]],  l=1..L-1
    #   5+L-1 .. 5+2(L-1)-1   : bias[l] (1, H)  = b_ih[l] + b_hh[l],    l=1..L-1
    #   then: W_lin (H, out), b_lin (1, out)
    #   outputs: out_ref (T-ws, B, out) time-major, hidden_ref (L, B, H)
    n_x = layers - 1
    full_proj_ref = refs[0]
    meas_ref = refs[1]
    init_state_ref = refs[2]
    whh0_ref = refs[3]
    w0cat_ref = refs[4]
    wcat_refs = refs[5:5 + n_x]
    bias_refs = refs[5 + n_x:5 + 2 * n_x]
    wlin_ref = refs[5 + 2 * n_x]
    blin_ref = refs[6 + 2 * n_x]
    out_ref = refs[7 + 2 * n_x]
    hidden_ref = refs[8 + 2 * n_x]

    B = full_proj_ref.shape[1]
    H = hidden_size
    T_out = out_ref.shape[0]                     # == T - ws
    assert meas_ref.shape[1] == ws * B

    # ---- load weights once; hoist all bias broadcasts out of the loops ------
    Whh0 = whh0_ref[...]
    W0cat = w0cat_ref[...]
    Wcat = [r[...] for r in wcat_refs]
    bias_small = [jnp.broadcast_to(r[...], (B, H)) for r in bias_refs]
    bias_stack = [jnp.broadcast_to(r[...], (ws * B, H)) for r in bias_refs]
    Wlin = wlin_ref[...]
    BlinB = jnp.broadcast_to(blin_ref[...], (B, out_size))

    def rnn_step(h, in_proj0, st, biases):
        """One RNN timestep over all layers for the rows stacked in h[0].

        in_proj0 already contains x_meas @ W_meas + b_ih[0] + b_hh[0].
        st is the layer-0 'state' input (rows, out), fused with h[0] into a
        single matmul against [W_state ; W_hh0]; None for pure-trajectory steps
        (whose full input projection was hoisted).
        """
        if st is None:
            pre0 = in_proj0 + jnp.dot(h[0], Whh0,
                                      preferred_element_type=jnp.float32)
        else:
            x0 = jnp.concatenate([st, h[0]], axis=1)          # (rows, out+H)
            pre0 = in_proj0 + jnp.dot(x0, W0cat,
                                      preferred_element_type=jnp.float32)
        x = jnp.tanh(pre0)
        new_h = [x]
        for l in range(1, layers):
            xc = jnp.concatenate([x, h[l]], axis=1)           # (rows, 2H)
            x = jnp.tanh(jnp.dot(xc, Wcat[l - 1],
                                 preferred_element_type=jnp.float32)
                         + biases[l - 1])
            new_h.append(x)
        return tuple(new_h)

    def head(h_top):                                          # (B, H) -> (B, out)
        return jnp.dot(h_top, Wlin, preferred_element_type=jnp.float32) + BlinB

    zeros_small = tuple(jnp.zeros((B, H), jnp.float32) for _ in range(layers))
    full_proj = [full_proj_ref[s] for s in range(ws)]         # static loads

    # ---- initial window ------------------------------------------------------
    h = zeros_small
    for s in range(ws):
        h = rnn_step(h, full_proj[s], None, bias_small)
    outs = [init_state_ref[...] + head(h[-1])]
    h_last = h
    out_ref[0] = outs[0]

    # ---- warm-up (t = 1 .. ws-1), unrolled (ws is small) ---------------------
    for t in range(1, ws):
        h = zeros_small
        for s in range(t, ws):
            h = rnn_step(h, full_proj[s], None, bias_small)
        for j in range(t):
            h = rnn_step(h, meas_ref[ws + t - 1 + j][0:B], outs[j], bias_small)
        outs.append(outs[-1] + head(h[-1]))
        h_last = h
        out_ref[t] = outs[t]

    # ---- main rollout (t = ws .. T-ws-1): pipelined, stacked windows ---------
    if T_out > ws:
        # Prologue: slot k holds window ws+k after its first (ws-1-k) timesteps.
        slots = []
        for k in range(ws):
            hk = zeros_small
            for j in range(ws - 1 - k):
                hk = rnn_step(hk, meas_ref[ws + k + j][0:B], outs[k + j],
                              bias_small)
            slots.append(hk)
        Hs0 = tuple(jnp.concatenate([slots[k][l] for k in range(ws)], axis=0)
                    for l in range(layers))                   # each (ws*B, H)
        zeros_BH = jnp.zeros((B, H), jnp.float32)

        def body(t, carry):
            Hs, last_out, _ = carry
            # Every in-flight window consumes the SAME (meas[t+ws-1], outs[t-1])
            # input at this iteration -> one fused (ws*B)-row matmul per layer.
            inp0 = meas_ref[t + ws - 1]                       # (ws*B, H), tiled
            st = jnp.concatenate([last_out] * ws, axis=0)     # (ws*B, out)
            new_Hs = rnn_step(Hs, inp0, st, bias_stack)
            # Slot 0 = window t just finished its last timestep.
            h_fin = tuple(hl[0:B] for hl in new_Hs)
            new_out = last_out + head(h_fin[-1])
            out_ref[t] = new_out
            # Retire slot 0; window t+ws starts with a zero hidden state.
            if ws > 1:
                shifted = tuple(jnp.concatenate([hl[B:], zeros_BH], axis=0)
                                for hl in new_Hs)
            else:
                shifted = (zeros_BH,) * layers
            return (shifted, new_out, h_fin)

        _, _, h_last = lax.fori_loop(ws, T_out, body,
                                     (Hs0, outs[ws - 1], h_last))

    # ---- hidden writeback ----------------------------------------------------
    for l in range(layers):
        hidden_ref[l] = h_last[l]


def or_rnn_forward(traj, w_ih_t, w_hh_t, b_ih, b_hh, w_lin_t, b_lin, *,
                   ws, out_size):
    """traj: (B, T, 2*out_size), batch-first (PyTorch nn.RNN batch_first=True).

    Weights are pre-transposed: w_ih_t[l] (in_l, H), w_hh_t[l] (H, H),
    w_lin_t (H, out); biases are (1, H) / (1, out).
    """
    B, T, D = traj.shape
    layers = len(w_ih_t)
    H = w_hh_t[0].shape[0]
    assert D == 2 * out_size, "forward() requires input_size == 2*out_size"
    # Pallas does no runtime bounds checks on VMEM refs; enforce statically.
    assert T >= 2 * ws and T >= 3 * ws - 3, "trajectory too short for rollout"

    f32 = jnp.float32
    traj = traj.astype(f32)
    w_ih0 = w_ih_t[0].astype(f32)                             # (D, H)
    bias0 = (b_ih[0] + b_hh[0]).astype(f32)                   # (1, H)

    # Hoisted layer-0 input projections (bias folded in), time-major.
    full_proj = jnp.einsum("btd,dh->tbh", traj[:, :ws, :], w_ih0) + bias0
    meas_proj = jnp.einsum("btd,dh->tbh", traj[:, :, :out_size],
                           w_ih0[:out_size, :]) + bias0       # (T, B, H)
    # Tile along the slot axis so the stacked rollout reads it directly; the
    # VMEM footprint is unchanged (each (B,H) slab pads to an (8,128) tile).
    meas_proj = jnp.tile(meas_proj, (1, ws, 1))               # (T, ws*B, H)
    init_state = traj[:, ws - 1, out_size:]                   # (B, out)

    # Fused per-layer weights: pre = [x | h] @ [W_ih ; W_hh] + bias.
    w0cat = jnp.concatenate([w_ih0[out_size:, :], w_hh_t[0].astype(f32)], axis=0)
    wcats = [jnp.concatenate([w_ih_t[l].astype(f32), w_hh_t[l].astype(f32)],
                             axis=0) for l in range(1, layers)]
    biases = [(b_ih[l] + b_hh[l]).astype(f32) for l in range(1, layers)]

    inputs = ([full_proj, meas_proj, init_state, w_hh_t[0].astype(f32), w0cat]
              + wcats + biases + [w_lin_t.astype(f32), b_lin.astype(f32)])

    kernel = functools.partial(_or_rnn_kernel, ws=ws, out_size=out_size,
                               layers=layers, hidden_size=H)
    vmem = pl.BlockSpec(memory_space=pltpu.MemorySpace.VMEM)
    out_tm, hidden = pl.pallas_call(
        kernel,
        out_shape=(jax.ShapeDtypeStruct((T - ws, B, out_size), f32),
                   jax.ShapeDtypeStruct((layers, B, H), f32)),
        in_specs=[vmem] * len(inputs),
        out_specs=(vmem, vmem),
    )(*inputs)
    return jnp.transpose(out_tm, (1, 0, 2)), hidden


def or_rnn_reference(traj, w_ih_t, w_hh_t, b_ih, b_hh, w_lin_t, b_lin, *,
                     ws, out_size):
    """Pure-JAX reference with the original PyTorch semantics (verification)."""
    B, T, _ = traj.shape
    layers = len(w_ih_t)
    H = w_hh_t[0].shape[0]

    def run_rnn(xs):
        h = [jnp.zeros((B, H), jnp.float32) for _ in range(layers)]
        for x in xs:
            for l in range(layers):
                pre = x @ w_ih_t[l] + h[l] @ w_hh_t[l] + b_ih[l] + b_hh[l]
                h[l] = jnp.tanh(pre)
                x = h[l]
        return h[-1] @ w_lin_t + b_lin, h

    outs = []
    pred, h = run_rnn([traj[:, s, :] for s in range(ws)])
    outs.append(traj[:, ws - 1, out_size:] + pred)
    for t in range(1, ws):
        xs = [traj[:, s, :] for s in range(t, ws)]
        xs += [jnp.concatenate([traj[:, ws + t - 1 + j, 0:out_size], outs[j]],
                               axis=1) for j in range(t)]
        pred, h = run_rnn(xs)
        outs.append(outs[-1] + pred)
    for t in range(ws, T - ws):
        xs = [jnp.concatenate([traj[:, t + j, 0:out_size], outs[t - ws + j]],
                              axis=1) for j in range(ws)]
        pred, h = run_rnn(xs)
        outs.append(outs[-1] + pred)
    return jnp.stack(outs, axis=1), jnp.stack(h, axis=0)


if __name__ == "__main__":
    B, T = 2, 16
    out_size = 4
    input_size = 2 * out_size      # forward() requires input_size == 2*out_size
    hidden_size = 32
    layers = 2
    ws = 4

    key = jax.random.PRNGKey(0)
    key, kx = jax.random.split(key)
    traj = jax.random.normal(kx, (B, T, input_size), dtype=jnp.float32)

    # PyTorch-style uniform(-1/sqrt(H), 1/sqrt(H)) parameters (pre-transposed).
    bound = 1.0 / np.sqrt(hidden_size)
    w_ih_t, w_hh_t, b_ih, b_hh = [], [], [], []
    for l in range(layers):
        in_l = input_size if l == 0 else hidden_size
        key, k1, k2, k3, k4 = jax.random.split(key, 5)
        w_ih_t.append(jax.random.uniform(k1, (in_l, hidden_size), jnp.float32,
                                         -bound, bound))
        w_hh_t.append(jax.random.uniform(k2, (hidden_size, hidden_size),
                                         jnp.float32, -bound, bound))
        b_ih.append(jax.random.uniform(k3, (1, hidden_size), jnp.float32,
                                       -bound, bound))
        b_hh.append(jax.random.uniform(k4, (1, hidden_size), jnp.float32,
                                       -bound, bound))
    key, k5, k6 = jax.random.split(key, 3)
    w_lin_t = jax.random.uniform(k5, (hidden_size, out_size), jnp.float32,
                                 -bound, bound)
    b_lin = jax.random.uniform(k6, (1, out_size), jnp.float32, -bound, bound)

    out, hidden = or_rnn_forward(traj, w_ih_t, w_hh_t, b_ih, b_hh,
                                 w_lin_t, b_lin, ws=ws, out_size=out_size)
    jax.block_until_ready((out, hidden))

    assert out.shape == (B, T - ws, out_size)
    assert hidden.shape == (layers, B, hidden_size)

    ref_out, ref_hidden = or_rnn_reference(traj, w_ih_t, w_hh_t, b_ih, b_hh,
                                           w_lin_t, b_lin, ws=ws,
                                           out_size=out_size)
    # All-f32 kernel: keep the tolerance tight (only matmul reassociation).
    np.testing.assert_allclose(np.asarray(out), np.asarray(ref_out),
                               rtol=1e-4, atol=1e-4)
    np.testing.assert_allclose(np.asarray(hidden), np.asarray(ref_hidden),
                               rtol=1e-4, atol=1e-4)

    print("KERNEL_OK")
</pallas_src>

<mosaic_0001>
module attributes {stable_mosaic.version = 11 : i64} {
  func.func @_or_rnn_kernel(%arg0: memref<4x2x32xf32, #tpu.memory_space<vmem>>, %arg1: memref<16x8x32xf32, #tpu.memory_space<vmem>>, %arg2: memref<2x4xf32, #tpu.memory_space<vmem>>, %arg3: memref<32x32xf32, #tpu.memory_space<vmem>>, %arg4: memref<36x32xf32, #tpu.memory_space<vmem>>, %arg5: memref<64x32xf32, #tpu.memory_space<vmem>>, %arg6: memref<1x32xf32, #tpu.memory_space<vmem>>, %arg7: memref<32x4xf32, #tpu.memory_space<vmem>>, %arg8: memref<1x4xf32, #tpu.memory_space<vmem>>, %arg9: memref<12x2x4xf32, #tpu.memory_space<vmem>>, %arg10: memref<2x2x32xf32, #tpu.memory_space<vmem>>) attributes {dimension_semantics = [], scalar_prefetch = 0 : i64, scratch_operands = 0 : i64, tpu.core_type = #tpu.core_type<tc>} {
    %c0 = arith.constant 0 : index
    %c0_0 = arith.constant 0 : index
    %0 = vector.load %arg3[%c0, %c0_0] : memref<32x32xf32, #tpu.memory_space<vmem>>, vector<32x32xf32>
    %c0_1 = arith.constant 0 : index
    %c0_2 = arith.constant 0 : index
    %1 = vector.load %arg4[%c0_1, %c0_2] : memref<36x32xf32, #tpu.memory_space<vmem>>, vector<36x32xf32>
    %c0_3 = arith.constant 0 : index
    %c0_4 = arith.constant 0 : index
    %2 = vector.load %arg5[%c0_3, %c0_4] : memref<64x32xf32, #tpu.memory_space<vmem>>, vector<64x32xf32>
    %c0_5 = arith.constant 0 : index
    %c0_6 = arith.constant 0 : index
    %3 = vector.load %arg6[%c0_5, %c0_6] : memref<1x32xf32, #tpu.memory_space<vmem>>, vector<1x32xf32>
    %4 = vector.shape_cast %3 : vector<1x32xf32> to vector<1x32xf32>
    %5 = vector.broadcast %4 : vector<1x32xf32> to vector<2x32xf32>
    %c0_7 = arith.constant 0 : index
    %c0_8 = arith.constant 0 : index
    %6 = vector.load %arg6[%c0_7, %c0_8] : memref<1x32xf32, #tpu.memory_space<vmem>>, vector<1x32xf32>
    %7 = vector.shape_cast %6 : vector<1x32xf32> to vector<1x32xf32>
    %8 = vector.broadcast %7 : vector<1x32xf32> to vector<8x32xf32>
    %c0_9 = arith.constant 0 : index
    %c0_10 = arith.constant 0 : index
    %9 = vector.load %arg7[%c0_9, %c0_10] : memref<32x4xf32, #tpu.memory_space<vmem>>, vector<32x4xf32>
    %c0_11 = arith.constant 0 : index
    %c0_12 = arith.constant 0 : index
    %10 = vector.load %arg8[%c0_11, %c0_12] : memref<1x4xf32, #tpu.memory_space<vmem>>, vector<1x4xf32>
    %11 = vector.shape_cast %10 : vector<1x4xf32> to vector<1x4xf32>
    %12 = vector.broadcast %11 : vector<1x4xf32> to vector<2x4xf32>
    %cst = arith.constant 0.000000e+00 : f32
    %13 = vector.broadcast %cst : f32 to vector<2x32xf32>
    %cst_13 = arith.constant 0.000000e+00 : f32
    %14 = vector.broadcast %cst_13 : f32 to vector<2x32xf32>
    %c0_14 = arith.constant 0 : index
    %c0_15 = arith.constant 0 : index
    %c0_16 = arith.constant 0 : index
    %15 = vector.load %arg0[%c0_14, %c0_15, %c0_16] : memref<4x2x32xf32, #tpu.memory_space<vmem>>, vector<1x2x32xf32>
    %16 = vector.shape_cast %15 : vector<1x2x32xf32> to vector<2x32xf32>
    %c1 = arith.constant 1 : index
    %c0_17 = arith.constant 0 : index
    %c0_18 = arith.constant 0 : index
    %17 = vector.load %arg0[%c1, %c0_17, %c0_18] : memref<4x2x32xf32, #tpu.memory_space<vmem>>, vector<1x2x32xf32>
    %18 = vector.shape_cast %17 : vector<1x2x32xf32> to vector<2x32xf32>
    %c2 = arith.constant 2 : index
    %c0_19 = arith.constant 0 : index
    %c0_20 = arith.constant 0 : index
    %19 = vector.load %arg0[%c2, %c0_19, %c0_20] : memref<4x2x32xf32, #tpu.memory_space<vmem>>, vector<1x2x32xf32>
    %20 = vector.shape_cast %19 : vector<1x2x32xf32> to vector<2x32xf32>
    %c3 = arith.constant 3 : index
    %c0_21 = arith.constant 0 : index
    %c0_22 = arith.constant 0 : index
    %21 = vector.load %arg0[%c3, %c0_21, %c0_22] : memref<4x2x32xf32, #tpu.memory_space<vmem>>, vector<1x2x32xf32>
    %22 = vector.shape_cast %21 : vector<1x2x32xf32> to vector<2x32xf32>
    %cst_23 = arith.constant dense<0.000000e+00> : vector<2x32xf32>
    %23 = tpu.matmul %13, %0, %cst_23 {dimension_numbers = #tpu.dot_dimension_numbers<[1], [0], [0], [1], [0, 0, 1, 1], [], []>} : vector<2x32xf32>, vector<32x32xf32>, vector<2x32xf32> -> vector<2x32xf32>
    %24 = arith.addf %16, %23 : vector<2x32xf32>
    %25 = math.tanh %24 : vector<2x32xf32>
    %26 = tpu.concatenate %25, %14 in 1 : vector<2x32xf32>, vector<2x32xf32> -> vector<2x64xf32>
    %cst_24 = arith.constant dense<0.000000e+00> : vector<2x32xf32>
    %27 = tpu.matmul %26, %2, %cst_24 {dimension_numbers = #tpu.dot_dimension_numbers<[1], [0], [0], [1], [0, 0, 1, 1], [], []>} : vector<2x64xf32>, vector<64x32xf32>, vector<2x32xf32> -> vector<2x32xf32>
    %28 = arith.addf %27, %5 : vector<2x32xf32>
    %29 = math.tanh %28 : vector<2x32xf32>
    %cst_25 = arith.constant dense<0.000000e+00> : vector<2x32xf32>
    %30 = tpu.matmul %25, %0, %cst_25 {dimension_numbers = #tpu.dot_dimension_numbers<[1], [0], [0], [1], [0, 0, 1, 1], [], []>} : vector<2x32xf32>, vector<32x32xf32>, vector<2x32xf32> -> vector<2x32xf32>
    %31 = arith.addf %18, %30 : vector<2x32xf32>
    %32 = math.tanh %31 : vector<2x32xf32>
    %33 = tpu.concatenate %32, %29 in 1 : vector<2x32xf32>, vector<2x32xf32> -> vector<2x64xf32>
    %cst_26 = arith.constant dense<0.000000e+00> : vector<2x32xf32>
    %34 = tpu.matmul %33, %2, %cst_26 {dimension_numbers = #tpu.dot_dimension_numbers<[1], [0], [0], [1], [0, 0, 1, 1], [], []>} : vector<2x64xf32>, vector<64x32xf32>, vector<2x32xf32> -> vector<2x32xf32>
    %35 = arith.addf %34, %5 : vector<2x32xf32>
    %36 = math.tanh %35 : vector<2x32xf32>
    %cst_27 = arith.constant dense<0.000000e+00> : vector<2x32xf32>
    %37 = tpu.matmul %32, %0, %cst_27 {dimension_numbers = #tpu.dot_dimension_numbers<[1], [0], [0], [1], [0, 0, 1, 1], [], []>} : vector<2x32xf32>, vector<32x32xf32>, vector<2x32xf32> -> vector<2x32xf32>
    %38 = arith.addf %20, %37 : vector<2x32xf32>
    %39 = math.tanh %38 : vector<2x32xf32>
    %40 = tpu.concatenate %39, %36 in 1 : vector<2x32xf32>, vector<2x32xf32> -> vector<2x64xf32>
    %cst_28 = arith.constant dense<0.000000e+00> : vector<2x32xf32>
    %41 = tpu.matmul %40, %2, %cst_28 {dimension_numbers = #tpu.dot_dimension_numbers<[1], [0], [0], [1], [0, 0, 1, 1], [], []>} : vector<2x64xf32>, vector<64x32xf32>, vector<2x32xf32> -> vector<2x32xf32>
    %42 = arith.addf %41, %5 : vector<2x32xf32>
    %43 = math.tanh %42 : vector<2x32xf32>
    %cst_29 = arith.constant dense<0.000000e+00> : vector<2x32xf32>
    %44 = tpu.matmul %39, %0, %cst_29 {dimension_numbers = #tpu.dot_dimension_numbers<[1], [0], [0], [1], [0, 0, 1, 1], [], []>} : vector<2x32xf32>, vector<32x32xf32>, vector<2x32xf32> -> vector<2x32xf32>
    %45 = arith.addf %22, %44 : vector<2x32xf32>
    %46 = math.tanh %45 : vector<2x32xf32>
    %47 = tpu.concatenate %46, %43 in 1 : vector<2x32xf32>, vector<2x32xf32> -> vector<2x64xf32>
    %cst_30 = arith.constant dense<0.000000e+00> : vector<2x32xf32>
    %48 = tpu.matmul %47, %2, %cst_30 {dimension_numbers = #tpu.dot_dimension_numbers<[1], [0], [0], [1], [0, 0, 1, 1], [], []>} : vector<2x64xf32>, vector<64x32xf32>, vector<2x32xf32> -> vector<2x32xf32>
    %49 = arith.addf %48, %5 : vector<2x32xf32>
    %50 = math.tanh %49 : vector<2x32xf32>
    %c0_31 = arith.constant 0 : index
    %c0_32 = arith.constant 0 : index
    %51 = vector.load %arg2[%c0_31, %c0_32] : memref<2x4xf32, #tpu.memory_space<vmem>>, vector<2x4xf32>
    %cst_33 = arith.constant dense<0.000000e+00> : vector<2x4xf32>
    %52 = tpu.matmul %50, %9, %cst_33 {dimension_numbers = #tpu.dot_dimension_numbers<[1], [0], [0], [1], [0, 0, 1, 1], [], []>} : vector<2x32xf32>, vector<32x4xf32>, vector<2x4xf32> -> vector<2x4xf32>
    %53 = arith.addf %52, %12 : vector<2x4xf32>
    %54 = arith.addf %51, %53 : vector<2x4xf32>
    %c0_34 = arith.constant 0 : index
    %c0_35 = arith.constant 0 : index
    %c0_36 = arith.constant 0 : index
    %55 = vector.load %arg9[%c0_34, %c0_35, %c0_36] : memref<12x2x4xf32, #tpu.memory_space<vmem>>, vector<1x2x4xf32>
    %56 = vector.shape_cast %55 : vector<1x2x4xf32> to vector<2x4xf32>
    %57 = vector.shape_cast %54 : vector<2x4xf32> to vector<1x2x4xf32>
    tpu.vector_store %arg9[%c0_34, %c0_35, %c0_36], %57 {strides = array<i32>} : memref<12x2x4xf32, #tpu.memory_space<vmem>>, vector<1x2x4xf32>,
    %cst_37 = arith.constant dense<0.000000e+00> : vector<2x32xf32>
    %58 = tpu.matmul %13, %0, %cst_37 {dimension_numbers = #tpu.dot_dimension_numbers<[1], [0], [0], [1], [0, 0, 1, 1], [], []>} : vector<2x32xf32>, vector<32x32xf32>, vector<2x32xf32> -> vector<2x32xf32>
    %59 = arith.addf %18, %58 : vector<2x32xf32>
    %60 = math.tanh %59 : vector<2x32xf32>
    %61 = tpu.concatenate %60, %14 in 1 : vector<2x32xf32>, vector<2x32xf32> -> vector<2x64xf32>
    %cst_38 = arith.constant dense<0.000000e+00> : vector<2x32xf32>
    %62 = tpu.matmul %61, %2, %cst_38 {dimension_numbers = #tpu.dot_dimension_numbers<[1], [0], [0], [1], [0, 0, 1, 1], [], []>} : vector<2x64xf32>, vector<64x32xf32>, vector<2x32xf32> -> vector<2x32xf32>
    %63 = arith.addf %62, %5 : vector<2x32xf32>
    %64 = math.tanh %63 : vector<2x32xf32>
    %cst_39 = arith.constant dense<0.000000e+00> : vector<2x32xf32>
    %65 = tpu.matmul %60, %0, %cst_39 {dimension_numbers = #tpu.dot_dimension_numbers<[1], [0], [0], [1], [0, 0, 1, 1], [], []>} : vector<2x32xf32>, vector<32x32xf32>, vector<2x32xf32> -> vector<2x32xf32>
    %66 = arith.addf %20, %65 : vector<2x32xf32>
    %67 = math.tanh %66 : vector<2x32xf32>
    %68 = tpu.concatenate %67, %64 in 1 : vector<2x32xf32>, vector<2x32xf32> -> vector<2x64xf32>
    %cst_40 = arith.constant dense<0.000000e+00> : vector<2x32xf32>
    %69 = tpu.matmul %68, %2, %cst_40 {dimension_numbers = #tpu.dot_dimension_numbers<[1], [0], [0], [1], [0, 0, 1, 1], [], []>} : vector<2x64xf32>, vector<64x32xf32>, vector<2x32xf32> -> vector<2x32xf32>
    %70 = arith.addf %69, %5 : vector<2x32xf32>
    %71 = math.tanh %70 : vector<2x32xf32>
    %cst_41 = arith.constant dense<0.000000e+00> : vector<2x32xf32>
    %72 = tpu.matmul %67, %0, %cst_41 {dimension_numbers = #tpu.dot_dimension_numbers<[1], [0], [0], [1], [0, 0, 1, 1], [], []>} : vector<2x32xf32>, vector<32x32xf32>, vector<2x32xf32> -> vector<2x32xf32>
    %73 = arith.addf %22, %72 : vector<2x32xf32>
    %74 = math.tanh %73 : vector<2x32xf32>
    %75 = tpu.concatenate %74, %71 in 1 : vector<2x32xf32>, vector<2x32xf32> -> vector<2x64xf32>
    %cst_42 = arith.constant dense<0.000000e+00> : vector<2x32xf32>
    %76 = tpu.matmul %75, %2, %cst_42 {dimension_numbers = #tpu.dot_dimension_numbers<[1], [0], [0], [1], [0, 0, 1, 1], [], []>} : vector<2x64xf32>, vector<64x32xf32>, vector<2x32xf32> -> vector<2x32xf32>
    %77 = arith.addf %76, %5 : vector<2x32xf32>
    %78 = math.tanh %77 : vector<2x32xf32>
    %c4 = arith.constant 4 : index
    %c0_43 = arith.constant 0 : index
    %c0_44 = arith.constant 0 : index
    %79 = vector.load %arg1[%c4, %c0_43, %c0_44] : memref<16x8x32xf32, #tpu.memory_space<vmem>>, vector<1x8x32xf32>
    %80 = vector.shape_cast %79 : vector<1x8x32xf32> to vector<8x32xf32>
    %81 = vector.extract_strided_slice %80 {offsets = [0, 0], sizes = [2, 32], strides = [1, 1]} : vector<8x32xf32> to vector<2x32xf32>
    %82 = tpu.concatenate %54, %74 in 1 : vector<2x4xf32>, vector<2x32xf32> -> vector<2x36xf32>
    %cst_45 = arith.constant dense<0.000000e+00> : vector<2x32xf32>
    %83 = tpu.matmul %82, %1, %cst_45 {dimension_numbers = #tpu.dot_dimension_numbers<[1], [0], [0], [1], [0, 0, 1, 1], [], []>} : vector<2x36xf32>, vector<36x32xf32>, vector<2x32xf32> -> vector<2x32xf32>
    %84 = arith.addf %81, %83 : vector<2x32xf32>
    %85 = math.tanh %84 : vector<2x32xf32>
    %86 = tpu.concatenate %85, %78 in 1 : vector<2x32xf32>, vector<2x32xf32> -> vector<2x64xf32>
    %cst_46 = arith.constant dense<0.000000e+00> : vector<2x32xf32>
    %87 = tpu.matmul %86, %2, %cst_46 {dimension_numbers = #tpu.dot_dimension_numbers<[1], [0], [0], [1], [0, 0, 1, 1], [], []>} : vector<2x64xf32>, vector<64x32xf32>, vector<2x32xf32> -> vector<2x32xf32>
    %88 = arith.addf %87, %5 : vector<2x32xf32>
    %89 = math.tanh %88 : vector<2x32xf32>
    %cst_47 = arith.constant dense<0.000000e+00> : vector<2x4xf32>
    %90 = tpu.matmul %89, %9, %cst_47 {dimension_numbers = #tpu.dot_dimension_numbers<[1], [0], [0], [1], [0, 0, 1, 1], [], []>} : vector<2x32xf32>, vector<32x4xf32>, vector<2x4xf32> -> vector<2x4xf32>
    %91 = arith.addf %90, %12 : vector<2x4xf32>
    %92 = arith.addf %54, %91 : vector<2x4xf32>
    %c1_48 = arith.constant 1 : index
    %c0_49 = arith.constant 0 : index
    %c0_50 = arith.constant 0 : index
    %93 = vector.load %arg9[%c1_48, %c0_49, %c0_50] : memref<12x2x4xf32, #tpu.memory_space<vmem>>, vector<1x2x4xf32>
    %94 = vector.shape_cast %93 : vector<1x2x4xf32> to vector<2x4xf32>
    %95 = vector.shape_cast %92 : vector<2x4xf32> to vector<1x2x4xf32>
    tpu.vector_store %arg9[%c1_48, %c0_49, %c0_50], %95 {strides = array<i32>} : memref<12x2x4xf32, #tpu.memory_space<vmem>>, vector<1x2x4xf32>,
    %cst_51 = arith.constant dense<0.000000e+00> : vector<2x32xf32>
    %96 = tpu.matmul %13, %0, %cst_51 {dimension_numbers = #tpu.dot_dimension_numbers<[1], [0], [0], [1], [0, 0, 1, 1], [], []>} : vector<2x32xf32>, vector<32x32xf32>, vector<2x32xf32> -> vector<2x32xf32>
    %97 = arith.addf %20, %96 : vector<2x32xf32>
    %98 = math.tanh %97 : vector<2x32xf32>
    %99 = tpu.concatenate %98, %14 in 1 : vector<2x32xf32>, vector<2x32xf32> -> vector<2x64xf32>
    %cst_52 = arith.constant dense<0.000000e+00> : vector<2x32xf32>
    %100 = tpu.matmul %99, %2, %cst_52 {dimension_numbers = #tpu.dot_dimension_numbers<[1], [0], [0], [1], [0, 0, 1, 1], [], []>} : vector<2x64xf32>, vector<64x32xf32>, vector<2x32xf32> -> vector<2x32xf32>
    %101 = arith.addf %100, %5 : vector<2x32xf32>
    %102 = math.tanh %101 : vector<2x32xf32>
    %cst_53 = arith.constant dense<0.000000e+00> : vector<2x32xf32>
    %103 = tpu.matmul %98, %0, %cst_53 {dimension_numbers = #tpu.dot_dimension_numbers<[1], [0], [0], [1], [0, 0, 1, 1], [], []>} : vector<2x32xf32>, vector<32x32xf32>, vector<2x32xf32> -> vector<2x32xf32>
    %104 = arith.addf %22, %103 : vector<2x32xf32>
    %105 = math.tanh %104 : vector<2x32xf32>
    %106 = tpu.concatenate %105, %102 in 1 : vector<2x32xf32>, vector<2x32xf32> -> vector<2x64xf32>
    %cst_54 = arith.constant dense<0.000000e+00> : vector<2x32xf32>
    %107 = tpu.matmul %106, %2, %cst_54 {dimension_numbers = #tpu.dot_dimension_numbers<[1], [0], [0], [1], [0, 0, 1, 1], [], []>} : vector<2x64xf32>, vector<64x32xf32>, vector<2x32xf32> -> vector<2x32xf32>
    %108 = arith.addf %107, %5 : vector<2x32xf32>
    %109 = math.tanh %108 : vector<2x32xf32>
    %c5 = arith.constant 5 : index
    %c0_55 = arith.constant 0 : index
    %c0_56 = arith.constant 0 : index
    %110 = vector.load %arg1[%c5, %c0_55, %c0_56] : memref<16x8x32xf32, #tpu.memory_space<vmem>>, vector<1x8x32xf32>
    %111 = vector.shape_cast %110 : vector<1x8x32xf32> to vector<8x32xf32>
    %112 = vector.extract_strided_slice %111 {offsets = [0, 0], sizes = [2, 32], strides = [1, 1]} : vector<8x32xf32> to vector<2x32xf32>
    %113 = tpu.concatenate %54, %105 in 1 : vector<2x4xf32>, vector<2x32xf32> -> vector<2x36xf32>
    %cst_57 = arith.constant dense<0.000000e+00> : vector<2x32xf32>
    %114 = tpu.matmul %113, %1, %cst_57 {dimension_numbers = #tpu.dot_dimension_numbers<[1], [0], [0], [1], [0, 0, 1, 1], [], []>} : vector<2x36xf32>, vector<36x32xf32>, vector<2x32xf32> -> vector<2x32xf32>
    %115 = arith.addf %112, %114 : vector<2x32xf32>
    %116 = math.tanh %115 : vector<2x32xf32>
    %117 = tpu.concatenate %116, %109 in 1 : vector<2x32xf32>, vector<2x32xf32> -> vector<2x64xf32>
    %cst_58 = arith.constant dense<0.000000e+00> : vector<2x32xf32>
    %118 = tpu.matmul %117, %2, %cst_58 {dimension_numbers = #tpu.dot_dimension_numbers<[1], [0], [0], [1], [0, 0, 1, 1], [], []>} : vector<2x64xf32>, vector<64x32xf32>, vector<2x32xf32> -> vector<2x32xf32>
    %119 = arith.addf %118, %5 : vector<2x32xf32>
    %120 = math.tanh %119 : vector<2x32xf32>
    %c6 = arith.constant 6 : index
    %c0_59 = arith.constant 0 : index
    %c0_60 = arith.constant 0 : index
    %121 = vector.load %arg1[%c6, %c0_59, %c0_60] : memref<16x8x32xf32, #tpu.memory_space<vmem>>, vector<1x8x32xf32>
    %122 = vector.shape_cast %121 : vector<1x8x32xf32> to vector<8x32xf32>
    %123 = vector.extract_strided_slice %122 {offsets = [0, 0], sizes = [2, 32], strides = [1, 1]} : vector<8x32xf32> to vector<2x32xf32>
    %124 = tpu.concatenate %92, %116 in 1 : vector<2x4xf32>, vector<2x32xf32> -> vector<2x36xf32>
    %cst_61 = arith.constant dense<0.000000e+00> : vector<2x32xf32>
    %125 = tpu.matmul %124, %1, %cst_61 {dimension_numbers = #tpu.dot_dimension_numbers<[1], [0], [0], [1], [0, 0, 1, 1], [], []>} : vector<2x36xf32>, vector<36x32xf32>, vector<2x32xf32> -> vector<2x32xf32>
    %126 = arith.addf %123, %125 : vector<2x32xf32>
    %127 = math.tanh %126 : vector<2x32xf32>
    %128 = tpu.concatenate %127, %120 in 1 : vector<2x32xf32>, vector<2x32xf32> -> vector<2x64xf32>
    %cst_62 = arith.constant dense<0.000000e+00> : vector<2x32xf32>
    %129 = tpu.matmul %128, %2, %cst_62 {dimension_numbers = #tpu.dot_dimension_numbers<[1], [0], [0], [1], [0, 0, 1, 1], [], []>} : vector<2x64xf32>, vector<64x32xf32>, vector<2x32xf32> -> vector<2x32xf32>
    %130 = arith.addf %129, %5 : vector<2x32xf32>
    %131 = math.tanh %130 : vector<2x32xf32>
    %cst_63 = arith.constant dense<0.000000e+00> : vector<2x4xf32>
    %132 = tpu.matmul %131, %9, %cst_63 {dimension_numbers = #tpu.dot_dimension_numbers<[1], [0], [0], [1], [0, 0, 1, 1], [], []>} : vector<2x32xf32>, vector<32x4xf32>, vector<2x4xf32> -> vector<2x4xf32>
    %133 = arith.addf %132, %12 : vector<2x4xf32>
    %134 = arith.addf %92, %133 : vector<2x4xf32>
    %c2_64 = arith.constant 2 : index
    %c0_65 = arith.constant 0 : index
    %c0_66 = arith.constant 0 : index
    %135 = vector.load %arg9[%c2_64, %c0_65, %c0_66] : memref<12x2x4xf32, #tpu.memory_space<vmem>>, vector<1x2x4xf32>
    %136 = vector.shape_cast %135 : vector<1x2x4xf32> to vector<2x4xf32>
    %137 = vector.shape_cast %134 : vector<2x4xf32> to vector<1x2x4xf32>
    tpu.vector_store %arg9[%c2_64, %c0_65, %c0_66], %137 {strides = array<i32>} : memref<12x2x4xf32, #tpu.memory_space<vmem>>, vector<1x2x4xf32>,
    %cst_67 = arith.constant dense<0.000000e+00> : vector<2x32xf32>
    %138 = tpu.matmul %13, %0, %cst_67 {dimension_numbers = #tpu.dot_dimension_numbers<[1], [0], [0], [1], [0, 0, 1, 1], [], []>} : vector<2x32xf32>, vector<32x32xf32>, vector<2x32xf32> -> vector<2x32xf32>
    %139 = arith.addf %22, %138 : vector<2x32xf32>
    %140 = math.tanh %139 : vector<2x32xf32>
    %141 = tpu.concatenate %140, %14 in 1 : vector<2x32xf32>, vector<2x32xf32> -> vector<2x64xf32>
    %cst_68 = arith.constant dense<0.000000e+00> : vector<2x32xf32>
    %142 = tpu.matmul %141, %2, %cst_68 {dimension_numbers = #tpu.dot_dimension_numbers<[1], [0], [0], [1], [0, 0, 1, 1], [], []>} : vector<2x64xf32>, vector<64x32xf32>, vector<2x32xf32> -> vector<2x32xf32>
    %143 = arith.addf %142, %5 : vector<2x32xf32>
    %144 = math.tanh %143 : vector<2x32xf32>
    %c6_69 = arith.constant 6 : index
    %c0_70 = arith.constant 0 : index
    %c0_71 = arith.constant 0 : index
    %145 = vector.load %arg1[%c6_69, %c0_70, %c0_71] : memref<16x8x32xf32, #tpu.memory_space<vmem>>, vector<1x8x32xf32>
    %146 = vector.shape_cast %145 : vector<1x8x32xf32> to vector<8x32xf32>
    %147 = vector.extract_strided_slice %146 {offsets = [0, 0], sizes = [2, 32], strides = [1, 1]} : vector<8x32xf32> to vector<2x32xf32>
    %148 = tpu.concatenate %54, %140 in 1 : vector<2x4xf32>, vector<2x32xf32> -> vector<2x36xf32>
    %cst_72 = arith.constant dense<0.000000e+00> : vector<2x32xf32>
    %149 = tpu.matmul %148, %1, %cst_72 {dimension_numbers = #tpu.dot_dimension_numbers<[1], [0], [0], [1], [0, 0, 1, 1], [], []>} : vector<2x36xf32>, vector<36x32xf32>, vector<2x32xf32> -> vector<2x32xf32>
    %150 = arith.addf %147, %149 : vector<2x32xf32>
    %151 = math.tanh %150 : vector<2x32xf32>
    %152 = tpu.concatenate %151, %144 in 1 : vector<2x32xf32>, vector<2x32xf32> -> vector<2x64xf32>
    %cst_73 = arith.constant dense<0.000000e+00> : vector<2x32xf32>
    %153 = tpu.matmul %152, %2, %cst_73 {dimension_numbers = #tpu.dot_dimension_numbers<[1], [0], [0], [1], [0, 0, 1, 1], [], []>} : vector<2x64xf32>, vector<64x32xf32>, vector<2x32xf32> -> vector<2x32xf32>
    %154 = arith.addf %153, %5 : vector<2x32xf32>
    %155 = math.tanh %154 : vector<2x32xf32>
    %c7 = arith.constant 7 : index
    %c0_74 = arith.constant 0 : index
    %c0_75 = arith.constant 0 : index
    %156 = vector.load %arg1[%c7, %c0_74, %c0_75] : memref<16x8x32xf32, #tpu.memory_space<vmem>>, vector<1x8x32xf32>
    %157 = vector.shape_cast %156 : vector<1x8x32xf32> to vector<8x32xf32>
    %158 = vector.extract_strided_slice %157 {offsets = [0, 0], sizes = [2, 32], strides = [1, 1]} : vector<8x32xf32> to vector<2x32xf32>
    %159 = tpu.concatenate %92, %151 in 1 : vector<2x4xf32>, vector<2x32xf32> -> vector<2x36xf32>
    %cst_76 = arith.constant dense<0.000000e+00> : vector<2x32xf32>
    %160 = tpu.matmul %159, %1, %cst_76 {dimension_numbers = #tpu.dot_dimension_numbers<[1], [0], [0], [1], [0, 0, 1, 1], [], []>} : vector<2x36xf32>, vector<36x32xf32>, vector<2x32xf32> -> vector<2x32xf32>
    %161 = arith.addf %158, %160 : vector<2x32xf32>
    %162 = math.tanh %161 : vector<2x32xf32>
    %163 = tpu.concatenate %162, %155 in 1 : vector<2x32xf32>, vector<2x32xf32> -> vector<2x64xf32>
    %cst_77 = arith.constant dense<0.000000e+00> : vector<2x32xf32>
    %164 = tpu.matmul %163, %2, %cst_77 {dimension_numbers = #tpu.dot_dimension_numbers<[1], [0], [0], [1], [0, 0, 1, 1], [], []>} : vector<2x64xf32>, vector<64x32xf32>, vector<2x32xf32> -> vector<2x32xf32>
    %165 = arith.addf %164, %5 : vector<2x32xf32>
    %166 = math.tanh %165 : vector<2x32xf32>
    %c8 = arith.constant 8 : index
    %c0_78 = arith.constant 0 : index
    %c0_79 = arith.constant 0 : index
    %167 = vector.load %arg1[%c8, %c0_78, %c0_79] : memref<16x8x32xf32, #tpu.memory_space<vmem>>, vector<1x8x32xf32>
    %168 = vector.shape_cast %167 : vector<1x8x32xf32> to vector<8x32xf32>
    %169 = vector.extract_strided_slice %168 {offsets = [0, 0], sizes = [2, 32], strides = [1, 1]} : vector<8x32xf32> to vector<2x32xf32>
    %170 = tpu.concatenate %134, %162 in 1 : vector<2x4xf32>, vector<2x32xf32> -> vector<2x36xf32>
    %cst_80 = arith.constant dense<0.000000e+00> : vector<2x32xf32>
    %171 = tpu.matmul %170, %1, %cst_80 {dimension_numbers = #tpu.dot_dimension_numbers<[1], [0], [0], [1], [0, 0, 1, 1], [], []>} : vector<2x36xf32>, vector<36x32xf32>, vector<2x32xf32> -> vector<2x32xf32>
    %172 = arith.addf %169, %171 : vector<2x32xf32>
    %173 = math.tanh %172 : vector<2x32xf32>
    %174 = tpu.concatenate %173, %166 in 1 : vector<2x32xf32>, vector<2x32xf32> -> vector<2x64xf32>
    %cst_81 = arith.constant dense<0.000000e+00> : vector<2x32xf32>
    %175 = tpu.matmul %174, %2, %cst_81 {dimension_numbers = #tpu.dot_dimension_numbers<[1], [0], [0], [1], [0, 0, 1, 1], [], []>} : vector<2x64xf32>, vector<64x32xf32>, vector<2x32xf32> -> vector<2x32xf32>
    %176 = arith.addf %175, %5 : vector<2x32xf32>
    %177 = math.tanh %176 : vector<2x32xf32>
    %cst_82 = arith.constant dense<0.000000e+00> : vector<2x4xf32>
    %178 = tpu.matmul %177, %9, %cst_82 {dimension_numbers = #tpu.dot_dimension_numbers<[1], [0], [0], [1], [0, 0, 1, 1], [], []>} : vector<2x32xf32>, vector<32x4xf32>, vector<2x4xf32> -> vector<2x4xf32>
    %179 = arith.addf %178, %12 : vector<2x4xf32>
    %180 = arith.addf %134, %179 : vector<2x4xf32>
    %c3_83 = arith.constant 3 : index
    %c0_84 = arith.constant 0 : index
    %c0_85 = arith.constant 0 : index
    %181 = vector.load %arg9[%c3_83, %c0_84, %c0_85] : memref<12x2x4xf32, #tpu.memory_space<vmem>>, vector<1x2x4xf32>
    %182 = vector.shape_cast %181 : vector<1x2x4xf32> to vector<2x4xf32>
    %183 = vector.shape_cast %180 : vector<2x4xf32> to vector<1x2x4xf32>
    tpu.vector_store %arg9[%c3_83, %c0_84, %c0_85], %183 {strides = array<i32>} : memref<12x2x4xf32, #tpu.memory_space<vmem>>, vector<1x2x4xf32>,
    %c4_86 = arith.constant 4 : index
    %c0_87 = arith.constant 0 : index
    %c0_88 = arith.constant 0 : index
    %184 = vector.load %arg1[%c4_86, %c0_87, %c0_88] : memref<16x8x32xf32, #tpu.memory_space<vmem>>, vector<1x8x32xf32>
    %185 = vector.shape_cast %184 : vector<1x8x32xf32> to vector<8x32xf32>
    %186 = vector.extract_strided_slice %185 {offsets = [0, 0], sizes = [2, 32], strides = [1, 1]} : vector<8x32xf32> to vector<2x32xf32>
    %187 = tpu.concatenate %54, %13 in 1 : vector<2x4xf32>, vector<2x32xf32> -> vector<2x36xf32>
    %cst_89 = arith.constant dense<0.000000e+00> : vector<2x32xf32>
    %188 = tpu.matmul %187, %1, %cst_89 {dimension_numbers = #tpu.dot_dimension_numbers<[1], [0], [0], [1], [0, 0, 1, 1], [], []>} : vector<2x36xf32>, vector<36x32xf32>, vector<2x32xf32> -> vector<2x32xf32>
    %189 = arith.addf %186, %188 : vector<2x32xf32>
    %190 = math.tanh %189 : vector<2x32xf32>
    %191 = tpu.concatenate %190, %14 in 1 : vector<2x32xf32>, vector<2x32xf32> -> vector<2x64xf32>
    %cst_90 = arith.constant dense<0.000000e+00> : vector<2x32xf32>
    %192 = tpu.matmul %191, %2, %cst_90 {dimension_numbers = #tpu.dot_dimension_numbers<[1], [0], [0], [1], [0, 0, 1, 1], [], []>} : vector<2x64xf32>, vector<64x32xf32>, vector<2x32xf32> -> vector<2x32xf32>
    %193 = arith.addf %192, %5 : vector<2x32xf32>
    %194 = math.tanh %193 : vector<2x32xf32>
    %c5_91 = arith.constant 5 : index
    %c0_92 = arith.constant 0 : index
    %c0_93 = arith.constant 0 : index
    %195 = vector.load %arg1[%c5_91, %c0_92, %c0_93] : memref<16x8x32xf32, #tpu.memory_space<vmem>>, vector<1x8x32xf32>
    %196 = vector.shape_cast %195 : vector<1x8x32xf32> to vector<8x32xf32>
    %197 = vector.extract_strided_slice %196 {offsets = [0, 0], sizes = [2, 32], strides = [1, 1]} : vector<8x32xf32> to vector<2x32xf32>
    %198 = tpu.concatenate %92, %190 in 1 : vector<2x4xf32>, vector<2x32xf32> -> vector<2x36xf32>
    %cst_94 = arith.constant dense<0.000000e+00> : vector<2x32xf32>
    %199 = tpu.matmul %198, %1, %cst_94 {dimension_numbers = #tpu.dot_dimension_numbers<[1], [0], [0], [1], [0, 0, 1, 1], [], []>} : vector<2x36xf32>, vector<36x32xf32>, vector<2x32xf32> -> vector<2x32xf32>
    %200 = arith.addf %197, %199 : vector<2x32xf32>
    %201 = math.tanh %200 : vector<2x32xf32>
    %202 = tpu.concatenate %201, %194 in 1 : vector<2x32xf32>, vector<2x32xf32> -> vector<2x64xf32>
    %cst_95 = arith.constant dense<0.000000e+00> : vector<2x32xf32>
    %203 = tpu.matmul %202, %2, %cst_95 {dimension_numbers = #tpu.dot_dimension_numbers<[1], [0], [0], [1], [0, 0, 1, 1], [], []>} : vector<2x64xf32>, vector<64x32xf32>, vector<2x32xf32> -> vector<2x32xf32>
    %204 = arith.addf %203, %5 : vector<2x32xf32>
    %205 = math.tanh %204 : vector<2x32xf32>
    %c6_96 = arith.constant 6 : index
    %c0_97 = arith.constant 0 : index
    %c0_98 = arith.constant 0 : index
    %206 = vector.load %arg1[%c6_96, %c0_97, %c0_98] : memref<16x8x32xf32, #tpu.memory_space<vmem>>, vector<1x8x32xf32>
    %207 = vector.shape_cast %206 : vector<1x8x32xf32> to vector<8x32xf32>
    %208 = vector.extract_strided_slice %207 {offsets = [0, 0], sizes = [2, 32], strides = [1, 1]} : vector<8x32xf32> to vector<2x32xf32>
    %209 = tpu.concatenate %134, %201 in 1 : vector<2x4xf32>, vector<2x32xf32> -> vector<2x36xf32>
    %cst_99 = arith.constant dense<0.000000e+00> : vector<2x32xf32>
    %210 = tpu.matmul %209, %1, %cst_99 {dimension_numbers = #tpu.dot_dimension_numbers<[1], [0], [0], [1], [0, 0, 1, 1], [], []>} : vector<2x36xf32>, vector<36x32xf32>, vector<2x32xf32> -> vector<2x32xf32>
    %211 = arith.addf %208, %210 : vector<2x32xf32>
    %212 = math.tanh %211 : vector<2x32xf32>
    %213 = tpu.concatenate %212, %205 in 1 : vector<2x32xf32>, vector<2x32xf32> -> vector<2x64xf32>
    %cst_100 = arith.constant dense<0.000000e+00> : vector<2x32xf32>
    %214 = tpu.matmul %213, %2, %cst_100 {dimension_numbers = #tpu.dot_dimension_numbers<[1], [0], [0], [1], [0, 0, 1, 1], [], []>} : vector<2x64xf32>, vector<64x32xf32>, vector<2x32xf32> -> vector<2x32xf32>
    %215 = arith.addf %214, %5 : vector<2x32xf32>
    %216 = math.tanh %215 : vector<2x32xf32>
    %c5_101 = arith.constant 5 : index
    %c0_102 = arith.constant 0 : index
    %c0_103 = arith.constant 0 : index
    %217 = vector.load %arg1[%c5_101, %c0_102, %c0_103] : memref<16x8x32xf32, #tpu.memory_space<vmem>>, vector<1x8x32xf32>
    %218 = vector.shape_cast %217 : vector<1x8x32xf32> to vector<8x32xf32>
    %219 = vector.extract_strided_slice %218 {offsets = [0, 0], sizes = [2, 32], strides = [1, 1]} : vector<8x32xf32> to vector<2x32xf32>
    %220 = tpu.concatenate %92, %13 in 1 : vector<2x4xf32>, vector<2x32xf32> -> vector<2x36xf32>
    %cst_104 = arith.constant dense<0.000000e+00> : vector<2x32xf32>
    %221 = tpu.matmul %220, %1, %cst_104 {dimension_numbers = #tpu.dot_dimension_numbers<[1], [0], [0], [1], [0, 0, 1, 1], [], []>} : vector<2x36xf32>, vector<36x32xf32>, vector<2x32xf32> -> vector<2x32xf32>
    %222 = arith.addf %219, %221 : vector<2x32xf32>
    %223 = math.tanh %222 : vector<2x32xf32>
    %224 = tpu.concatenate %223, %14 in 1 : vector<2x32xf32>, vector<2x32xf32> -> vector<2x64xf32>
    %cst_105 = arith.constant dense<0.000000e+00> : vector<2x32xf32>
    %225 = tpu.matmul %224, %2, %cst_105 {dimension_numbers = #tpu.dot_dimension_numbers<[1], [0], [0], [1], [0, 0, 1, 1], [], []>} : vector<2x64xf32>, vector<64x32xf32>, vector<2x32xf32> -> vector<2x32xf32>
    %226 = arith.addf %225, %5 : vector<2x32xf32>
    %227 = math.tanh %226 : vector<2x32xf32>
    %c6_106 = arith.constant 6 : index
    %c0_107 = arith.constant 0 : index
    %c0_108 = arith.constant 0 : index
    %228 = vector.load %arg1[%c6_106, %c0_107, %c0_108] : memref<16x8x32xf32, #tpu.memory_space<vmem>>, vector<1x8x32xf32>
    %229 = vector.shape_cast %228 : vector<1x8x32xf32> to vector<8x32xf32>
    %230 = vector.extract_strided_slice %229 {offsets = [0, 0], sizes = [2, 32], strides = [1, 1]} : vector<8x32xf32> to vector<2x32xf32>
    %231 = tpu.concatenate %134, %223 in 1 : vector<2x4xf32>, vector<2x32xf32> -> vector<2x36xf32>
    %cst_109 = arith.constant dense<0.000000e+00> : vector<2x32xf32>
    %232 = tpu.matmul %231, %1, %cst_109 {dimension_numbers = #tpu.dot_dimension_numbers<[1], [0], [0], [1], [0, 0, 1, 1], [], []>} : vector<2x36xf32>, vector<36x32xf32>, vector<2x32xf32> -> vector<2x32xf32>
    %233 = arith.addf %230, %232 : vector<2x32xf32>
    %234 = math.tanh %233 : vector<2x32xf32>
    %235 = tpu.concatenate %234, %227 in 1 : vector<2x32xf32>, vector<2x32xf32> -> vector<2x64xf32>
    %cst_110 = arith.constant dense<0.000000e+00> : vector<2x32xf32>
    %236 = tpu.matmul %235, %2, %cst_110 {dimension_numbers = #tpu.dot_dimension_numbers<[1], [0], [0], [1], [0, 0, 1, 1], [], []>} : vector<2x64xf32>, vector<64x32xf32>, vector<2x32xf32> -> vector<2x32xf32>
    %237 = arith.addf %236, %5 : vector<2x32xf32>
    %238 = math.tanh %237 : vector<2x32xf32>
    %c6_111 = arith.constant 6 : index
    %c0_112 = arith.constant 0 : index
    %c0_113 = arith.constant 0 : index
    %239 = vector.load %arg1[%c6_111, %c0_112, %c0_113] : memref<16x8x32xf32, #tpu.memory_space<vmem>>, vector<1x8x32xf32>
    %240 = vector.shape_cast %239 : vector<1x8x32xf32> to vector<8x32xf32>
    %241 = vector.extract_strided_slice %240 {offsets = [0, 0], sizes = [2, 32], strides = [1, 1]} : vector<8x32xf32> to vector<2x32xf32>
    %242 = tpu.concatenate %134, %13 in 1 : vector<2x4xf32>, vector<2x32xf32> -> vector<2x36xf32>
    %cst_114 = arith.constant dense<0.000000e+00> : vector<2x32xf32>
    %243 = tpu.matmul %242, %1, %cst_114 {dimension_numbers = #tpu.dot_dimension_numbers<[1], [0], [0], [1], [0, 0, 1, 1], [], []>} : vector<2x36xf32>, vector<36x32xf32>, vector<2x32xf32> -> vector<2x32xf32>
    %244 = arith.addf %241, %243 : vector<2x32xf32>
    %245 = math.tanh %244 : vector<2x32xf32>
    %246 = tpu.concatenate %245, %14 in 1 : vector<2x32xf32>, vector<2x32xf32> -> vector<2x64xf32>
    %cst_115 = arith.constant dense<0.000000e+00> : vector<2x32xf32>
    %247 = tpu.matmul %246, %2, %cst_115 {dimension_numbers = #tpu.dot_dimension_numbers<[1], [0], [0], [1], [0, 0, 1, 1], [], []>} : vector<2x64xf32>, vector<64x32xf32>, vector<2x32xf32> -> vector<2x32xf32>
    %248 = arith.addf %247, %5 : vector<2x32xf32>
    %249 = math.tanh %248 : vector<2x32xf32>
    %250 = tpu.concatenate %212, %234, %245, %13 in 0 : vector<2x32xf32>, vector<2x32xf32>, vector<2x32xf32>, vector<2x32xf32> -> vector<8x32xf32>
    %251 = tpu.concatenate %216, %238, %249, %14 in 0 : vector<2x32xf32>, vector<2x32xf32>, vector<2x32xf32>, vector<2x32xf32> -> vector<8x32xf32>
    %cst_116 = arith.constant 0.000000e+00 : f32
    %252 = vector.broadcast %cst_116 : f32 to vector<2x32xf32>
    %c4_i32 = arith.constant 4 : i32
    %c8_i32 = arith.constant 8 : i32
    %253 = arith.addi %c4_i32, %c8_i32 : i32
    %c1_i32 = arith.constant 1 : i32
    %254:5 = scf.for %arg11 = %c4_i32 to %253 step %c1_i32 iter_args(%arg12 = %250, %arg13 = %251, %arg14 = %180, %arg15 = %173, %arg16 = %177) -> (vector<8x32xf32>, vector<8x32xf32>, vector<2x4xf32>, vector<2x32xf32>, vector<2x32xf32>)  : i32 {
      %c4_i32_124 = arith.constant 4 : i32
      %261 = arith.addi %arg11, %c4_i32_124 : i32
      %c1_i32_125 = arith.constant 1 : i32
      %262 = arith.subi %261, %c1_i32_125 : i32
      %263 = arith.index_cast %262 : i32 to index
      %c0_126 = arith.constant 0 : index
      %c0_127 = arith.constant 0 : index
      %264 = vector.load %arg1[%263, %c0_126, %c0_127] : memref<16x8x32xf32, #tpu.memory_space<vmem>>, vector<1x8x32xf32>
      %265 = vector.shape_cast %264 : vector<1x8x32xf32> to vector<8x32xf32>
      %266 = tpu.concatenate %arg14, %arg14, %arg14, %arg14 in 0 : vector<2x4xf32>, vector<2x4xf32>, vector<2x4xf32>, vector<2x4xf32> -> vector<8x4xf32>
      %267 = tpu.concatenate %266, %arg12 in 1 : vector<8x4xf32>, vector<8x32xf32> -> vector<8x36xf32>
      %cst_128 = arith.constant dense<0.000000e+00> : vector<8x32xf32>
      %268 = tpu.matmul %267, %1, %cst_128 {dimension_numbers = #tpu.dot_dimension_numbers<[1], [0], [0], [1], [0, 0, 1, 1], [], []>} : vector<8x36xf32>, vector<36x32xf32>, vector<8x32xf32> -> vector<8x32xf32>
      %269 = arith.addf %265, %268 : vector<8x32xf32>
      %270 = math.tanh %269 : vector<8x32xf32>
      %271 = tpu.concatenate %270, %arg13 in 1 : vector<8x32xf32>, vector<8x32xf32> -> vector<8x64xf32>
      %cst_129 = arith.constant dense<0.000000e+00> : vector<8x32xf32>
      %272 = tpu.matmul %271, %2, %cst_129 {dimension_numbers = #tpu.dot_dimension_numbers<[1], [0], [0], [1], [0, 0, 1, 1], [], []>} : vector<8x64xf32>, vector<64x32xf32>, vector<8x32xf32> -> vector<8x32xf32>
      %273 = arith.addf %272, %8 : vector<8x32xf32>
      %274 = math.tanh %273 : vector<8x32xf32>
      %275 = vector.extract_strided_slice %270 {offsets = [0, 0], sizes = [2, 32], strides = [1, 1]} : vector<8x32xf32> to vector<2x32xf32>
      %276 = vector.extract_strided_slice %274 {offsets = [0, 0], sizes = [2, 32], strides = [1, 1]} : vector<8x32xf32> to vector<2x32xf32>
      %cst_130 = arith.constant dense<0.000000e+00> : vector<2x4xf32>
      %277 = tpu.matmul %276, %9, %cst_130 {dimension_numbers = #tpu.dot_dimension_numbers<[1], [0], [0], [1], [0, 0, 1, 1], [], []>} : vector<2x32xf32>, vector<32x4xf32>, vector<2x4xf32> -> vector<2x4xf32>
      %278 = arith.addf %277, %12 : vector<2x4xf32>
      %279 = arith.addf %arg14, %278 : vector<2x4xf32>
      %280 = arith.index_cast %arg11 : i32 to index
      %c0_131 = arith.constant 0 : index
      %c0_132 = arith.constant 0 : index
      %281 = vector.load %arg9[%280, %c0_131, %c0_132] : memref<12x2x4xf32, #tpu.memory_space<vmem>>, vector<1x2x4xf32>
      %282 = vector.shape_cast %281 : vector<1x2x4xf32> to vector<2x4xf32>
      %283 = vector.shape_cast %279 : vector<2x4xf32> to vector<1x2x4xf32>
      tpu.vector_store %arg9[%280, %c0_131, %c0_132], %283 {strides = array<i32>} : memref<12x2x4xf32, #tpu.memory_space<vmem>>, vector<1x2x4xf32>,
      %284 = vector.extract_strided_slice %270 {offsets = [2, 0], sizes = [6, 32], strides = [1, 1]} : vector<8x32xf32> to vector<6x32xf32>
      %285 = tpu.concatenate %284, %252 in 0 : vector<6x32xf32>, vector<2x32xf32> -> vector<8x32xf32>
      %286 = vector.extract_strided_slice %274 {offsets = [2, 0], sizes = [6, 32], strides = [1, 1]} : vector<8x32xf32> to vector<6x32xf32>
      %287 = tpu.concatenate %286, %252 in 0 : vector<6x32xf32>, vector<2x32xf32> -> vector<8x32xf32>
      scf.yield %285, %287, %279, %275, %276 : vector<8x32xf32>, vector<8x32xf32>, vector<2x4xf32>, vector<2x32xf32>, vector<2x32xf32>
    }
    %c8_i32_117 = arith.constant 8 : i32
    %c0_118 = arith.constant 0 : index
    %c0_119 = arith.constant 0 : index
    %c0_120 = arith.constant 0 : index
    %255 = vector.load %arg10[%c0_118, %c0_119, %c0_120] : memref<2x2x32xf32, #tpu.memory_space<vmem>>, vector<1x2x32xf32>
    %256 = vector.shape_cast %255 : vector<1x2x32xf32> to vector<2x32xf32>
    %257 = vector.shape_cast %254#3 : vector<2x32xf32> to vector<1x2x32xf32>
    tpu.vector_store %arg10[%c0_118, %c0_119, %c0_120], %257 {strides = array<i32>} : memref<2x2x32xf32, #tpu.memory_space<vmem>>, vector<1x2x32xf32>,
    %c1_121 = arith.constant 1 : index
    %c0_122 = arith.constant 0 : index
    %c0_123 = arith.constant 0 : index
    %258 = vector.load %arg10[%c1_121, %c0_122, %c0_123] : memref<2x2x32xf32, #tpu.memory_space<vmem>>, vector<1x2x32xf32>
    %259 = vector.shape_cast %258 : vector<1x2x32xf32> to vector<2x32xf32>
    %260 = vector.shape_cast %254#4 : vector<2x32xf32> to vector<1x2x32xf32>
    tpu.vector_store %arg10[%c1_121, %c0_122, %c0_123], %260 {strides = array<i32>} : memref<2x2x32xf32, #tpu.memory_space<vmem>>, vector<1x2x32xf32>,
    return
  }
}

</mosaic_0001>

<llo_original>
// kernel: tpu_custom_call.1
$region0: #{tpu_custom_call.1}
  #allocation0 [shape = 'u32[]', space=smem, size = 0x4, offset = 0x4, fixed_abs, tag = 'smem constant byte address 0x4 - core index']
  #allocation1 [shape = 'u32[72,128]{1,0:T(1,128)}', space=vmem, size = 0x9000, scoped, tag = 'internal scratch']
  %s0 = inlined_call_operand.vmem [shape: f32[4,2,32], index: 0, kind: input, shape index: {}]
  %s1 = inlined_call_operand.vmem [shape: f32[16,8,32], index: 1, kind: input, shape index: {}]
  %s2 = inlined_call_operand.vmem [shape: f32[2,4], index: 2, kind: input, shape index: {}]
  %s3 = inlined_call_operand.hbm [shape: f32[32,32], index: 3, kind: input, shape index: {}]
  %s4 = inlined_call_operand.vmem [shape: f32[36,32], index: 4, kind: input, shape index: {}]
  %s5 = inlined_call_operand.vmem [shape: f32[64,32], index: 5, kind: input, shape index: {}]
  %s6 = inlined_call_operand.vmem [shape: f32[1,32], index: 6, kind: input, shape index: {}]
  %s7 = inlined_call_operand.vmem [shape: f32[32,4], index: 7, kind: input, shape index: {}]
  %s8 = inlined_call_operand.vmem [shape: f32[1,4], index: 8, kind: input, shape index: {}]
  %s9 = inlined_call_operand.vmem [shape: f32[12,2,4], index: 9, kind: output, shape index: {0}]
  %s10 = inlined_call_operand.hbm [shape: f32[2,2,32], index: 10, kind: output, shape index: {1}]
  %11 = xla_tuple %s9, %s10
  %s12 = sld [smem:[#allocation0]]
  $region65: #{tpu_custom_call.1} parent=0
    _
  %s14 = ssub.s32 1, %s12
  %s15 = scalar_select 0, %s14, %s12
  $region1: #{tpu_custom_call.1} parent=0
    #allocation2 [shape = 'u8[16384]{0}', space=vmem, size = 0x4000, scoped, tag = 'input window, operand 3, single buffered']
    #allocation3 [shape = 's32[1]{0}', space=sflag, size = 0x4, scoped, tag = 'scoped memory for tpu_custom_call.1']
    #allocation4 [shape = 's32[1]{0}', space=sflag, size = 0x4, scoped, tag = 'scoped memory for tpu_custom_call.1']
    #allocation5 [shape = 'u8[2048]{0}', space=vmem, size = 0x800, scoped, tag = 'output window, operand 1, single buffered']
    %16 = vsyncpa [#allocation3], 0
    %17 = vsyncpa [#allocation4], 0
    // Predicated region
    $region2: #{tpu_custom_call.1} parent=1 // pred_check
      _
    $region3: #{tpu_custom_call.1} parent=1 // pred_check_branch
      %19 = sbr.rel (0) target = $region5
    $region4: #{tpu_custom_call.1} parent=1 // pred_region
      _
    $region5: #{tpu_custom_call.1} parent=1 // pred_fallthru
      _
    // Predicated region
    $region6: #{tpu_custom_call.1} parent=1 // pred_check
      _
    $region7: #{tpu_custom_call.1} parent=1 // pred_check_branch
      %21 = sbr.rel (0) target = $region9
    $region8: #{tpu_custom_call.1} parent=1 // pred_region
      _
    $region9: #{tpu_custom_call.1} parent=1 // pred_fallthru
      _
    // Predicated region
    $region10: #{tpu_custom_call.1} parent=1 // pred_check
      _
    $region11: #{tpu_custom_call.1} parent=1 // pred_check_branch
      %23 = sbr.rel (0) target = $region13
    $region12: #{tpu_custom_call.1} parent=1 // pred_region
      _
    $region13: #{tpu_custom_call.1} parent=1 // pred_fallthru
      _
    // Predicated region
    $region14: #{tpu_custom_call.1} parent=1 // pred_check
      _
    $region15: #{tpu_custom_call.1} parent=1 // pred_check_branch
      %25 = sbr.rel (0) target = $region17
    $region16: #{tpu_custom_call.1} parent=1 // pred_region
      %27 = vsyncadd [#allocation3], 0
      %s28 = sshll.u32 %s3, 4
      %s29 = int_to_ptr.hbm [resolvable:$true] %s28
      %s30 = sshll.u32 [#allocation2], 4
      %s31 = int_to_ptr.vmem [resolvable:$true] %s30
      %36 = dma.hbm_to_vmem [thread:$0]  %s29, 512, %s31, [#allocation3], 128, 128, 8
    $region17: #{tpu_custom_call.1} parent=1 // pred_fallthru
      _
    // Predicated region
    $region18: #{tpu_custom_call.1} parent=1 // pred_check
      _
    $region19: #{tpu_custom_call.1} parent=1 // pred_check_branch
      %38 = sbr.rel (0) target = $region21
    $region20: #{tpu_custom_call.1} parent=1 // pred_region
      _
    $region21: #{tpu_custom_call.1} parent=1 // pred_fallthru
      _
    // Predicated region
    $region22: #{tpu_custom_call.1} parent=1 // pred_check
      _
    $region23: #{tpu_custom_call.1} parent=1 // pred_check_branch
      %40 = sbr.rel (0) target = $region25
    $region24: #{tpu_custom_call.1} parent=1 // pred_region
      _
    $region25: #{tpu_custom_call.1} parent=1 // pred_fallthru
      _
    // Predicated region
    $region26: #{tpu_custom_call.1} parent=1 // pred_check
      _
    $region27: #{tpu_custom_call.1} parent=1 // pred_check_branch
      %42 = sbr.rel (0) target = $region29
    $region28: #{tpu_custom_call.1} parent=1 // pred_region
      _
    $region29: #{tpu_custom_call.1} parent=1 // pred_fallthru
      _
    // Predicated region
    $region30: #{tpu_custom_call.1} parent=1 // pred_check
      _
    $region31: #{tpu_custom_call.1} parent=1 // pred_check_branch
      %44 = sbr.rel (0) target = $region33
    $region32: #{tpu_custom_call.1} parent=1 // pred_region
      _
    $region33: #{tpu_custom_call.1} parent=1 // pred_fallthru
      _
    // Predicated region
    $region34: #{tpu_custom_call.1} parent=1 // pred_check
      _
    $region35: #{tpu_custom_call.1} parent=1 // pred_check_branch
      %46 = sbr.rel (0) target = $region37
    $region36: #{tpu_custom_call.1} parent=1 // pred_region
      _
    $region37: #{tpu_custom_call.1} parent=1 // pred_fallthru
      _
    // Predicated region
    $region38: #{tpu_custom_call.1} parent=1 // pred_check
      _
    $region39: #{tpu_custom_call.1} parent=1 // pred_check_branch
      %48 = sbr.rel (0) target = $region41
    $region40: #{tpu_custom_call.1} parent=1 // pred_region
      %50 = dma.done [#allocation3], 512
    $region41: #{tpu_custom_call.1} parent=1 // pred_fallthru
      _
    %v51 = vld [vmem:[#allocation2] sm:$0xff]
    %v52 = vld [vmem:[#allocation2 + $0x8] sm:$0xff]
    %v53 = vld [vmem:[#allocation2 + $0x10] sm:$0xff]
    %v54 = vld [vmem:[#allocation2 + $0x18] sm:$0xff]
    %v55 = vld [vmem:[%s4] sm:$0xff]
    %v56 = vld [vmem:[%s4 + $0x8] sm:$0xff]
    %v57 = vld [vmem:[%s4 + $0x10] sm:$0xff]
    %v58 = vld [vmem:[%s4 + $0x18] sm:$0xff]
    %v59 = vld [vmem:[%s4 + $0x20] sm:$0xf]
    %v60 = vld [vmem:[%s5] sm:$0xff]
    %v61 = vld [vmem:[%s5 + $0x8] sm:$0xff]
    %v62 = vld [vmem:[%s5 + $0x10] sm:$0xff]
    %v63 = vld [vmem:[%s5 + $0x18] sm:$0xff]
    %v64 = vld [vmem:[%s5 + $0x20] sm:$0xff]
    %v65 = vld [vmem:[%s5 + $0x28] sm:$0xff]
    %v66 = vld [vmem:[%s5 + $0x30] sm:$0xff]
    %v67 = vld [vmem:[%s5 + $0x38] sm:$0xff]
    %v68 = vld [vmem:[%s6] sm:$0x1]
    %v70 = vperm.slane %v68, 0
    %v72 = vld [vmem:[%s7] sm:$0xff]
    %v73 = vld [vmem:[%s7 + $0x8] sm:$0xff]
    %v74 = vld [vmem:[%s7 + $0x10] sm:$0xff]
    %v75 = vld [vmem:[%s7 + $0x18] sm:$0xff]
    %v76 = vld [vmem:[%s8] sm:$0x1]
    %v78 = vperm.slane %v76, 0
    %v80 = vld [vmem:[%s0] sm:$0x3]
    %s81 = scalar_lea.vmem %s0, 2
    %v82 = vld [vmem:[%s81] sm:$0x3]
    %s83 = scalar_lea.vmem %s0, 4
    %v84 = vld [vmem:[%s83] sm:$0x3]
    %s85 = scalar_lea.vmem %s0, 6
    %v86 = vld [vmem:[%s85] sm:$0x3]
    %vm87 = vcmask 261120
    %v89 = vsel %vm87, 0.0, 0
    %91 = vmatpush.msra.mxu0 0.0
    %92 = vmatpush.msra.mxu0 0.0
    %93 = vmatpush.msra.mxu0 0.0
    %94 = vmatpush.msra.mxu0 0.0
    %95 = vmatpush.msra.mxu0 0.0
    %96 = vmatpush.msra.mxu0 0.0
    %97 = vmatpush.msra.mxu0 0.0
    %98 = vmatpush.msra.mxu0 0.0
    %99 = vmatpush.msra.mxu0 0.0
    %100 = vmatpush.msra.mxu0 0.0
    %101 = vmatpush.msra.mxu0 0.0
    %102 = vmatpush.msra.mxu0 0.0
    %103 = vmatpush.msra.mxu0 %v54
    %104 = vmatpush.msra.mxu0 %v53
    %105 = vmatpush.msra.mxu0 %v52
    %106 = vmatpush.msra.mxu0 %v51
    %107 = vmatmul.f32.gmra.mxu0 %v89
    %v108 = vpop.f32.mrf.mxu0
    %v109 = vadd.f32 0.0, %v108
    %110 = vdwg.mxu0
    %v111 = vadd.f32 %v80, %v109
    %v112 = vtanh.pop %v111
    %v113 = vsel %vm87, %v112, 0.0
    %vm114 = vcmask 523264
    %v116 = vsel %vm114, %v113, 0
    %118 = vmatpush.msra.mxu0 0.0
    %119 = vmatpush.msra.mxu0 0.0
    %120 = vmatpush.msra.mxu0 0.0
    %121 = vmatpush.msra.mxu0 0.0
    %122 = vmatpush.msra.mxu0 0.0
    %123 = vmatpush.msra.mxu0 0.0
    %124 = vmatpush.msra.mxu0 0.0
    %125 = vmatpush.msra.mxu0 0.0
    %126 = vmatpush.msra.mxu0 %v67
    %127 = vmatpush.msra.mxu0 %v66
    %128 = vmatpush.msra.mxu0 %v65
    %129 = vmatpush.msra.mxu0 %v64
    %130 = vmatpush.msra.mxu0 %v63
    %131 = vmatpush.msra.mxu0 %v62
    %132 = vmatpush.msra.mxu0 %v61
    %133 = vmatpush.msra.mxu0 %v60
    %134 = vmatmul.f32.gmra.mxu0 %v116
    %v135 = vpop.f32.mrf.mxu0
    %v136 = vadd.f32 %v70, %v135
    %137 = vdwg.mxu0
    %v138 = vtanh.pop %v136
    %v140 = vsel %vm87, %v112, 0
    %142 = vmatpush.msra.mxu0 0.0
    %143 = vmatpush.msra.mxu0 0.0
    %144 = vmatpush.msra.mxu0 0.0
    %145 = vmatpush.msra.mxu0 0.0
    %146 = vmatpush.msra.mxu0 0.0
    %147 = vmatpush.msra.mxu0 0.0
    %148 = vmatpush.msra.mxu0 0.0
    %149 = vmatpush.msra.mxu0 0.0
    %150 = vmatpush.msra.mxu0 0.0
    %151 = vmatpush.msra.mxu0 0.0
    %152 = vmatpush.msra.mxu0 0.0
    %153 = vmatpush.msra.mxu0 0.0
    %154 = vmatpush.msra.mxu0 %v54
    %155 = vmatpush.msra.mxu0 %v53
    %156 = vmatpush.msra.mxu0 %v52
    %157 = vmatpush.msra.mxu0 %v51
    %158 = vmatmul.f32.gmra.mxu0 %v140
    %v159 = vpop.f32.mrf.mxu0
    %v160 = vadd.f32 0.0, %v159
    %161 = vdwg.mxu0
    %v162 = vadd.f32 %v82, %v160
    %v163 = vtanh.pop %v162
    %165 = vrot.lane.b32.xlu0 %v138, 32
    %v166 = vpop.permute.xlu0 %165
    %v168 = vsel %vm87, %v163, %v166
    %v170 = vsel %vm114, %v168, 0
    %172 = vmatpush.msra.mxu0 0.0
    %173 = vmatpush.msra.mxu0 0.0
    %174 = vmatpush.msra.mxu0 0.0
    %175 = vmatpush.msra.mxu0 0.0
    %176 = vmatpush.msra.mxu0 0.0
    %177 = vmatpush.msra.mxu0 0.0
    %178 = vmatpush.msra.mxu0 0.0
    %179 = vmatpush.msra.mxu0 0.0
    %180 = vmatpush.msra.mxu0 %v67
    %181 = vmatpush.msra.mxu0 %v66
    %182 = vmatpush.msra.mxu0 %v65
    %183 = vmatpush.msra.mxu0 %v64
    %184 = vmatpush.msra.mxu0 %v63
    %185 = vmatpush.msra.mxu0 %v62
    %186 = vmatpush.msra.mxu0 %v61
    %187 = vmatpush.msra.mxu0 %v60
    %188 = vmatmul.f32.gmra.mxu0 %v170
    %v189 = vpop.f32.mrf.mxu0
    %v190 = vadd.f32 %v70, %v189
    %191 = vdwg.mxu0
    %v192 = vtanh.pop %v190
    %v194 = vsel %vm87, %v163, 0
    %196 = vmatpush.msra.mxu0 0.0
    %197 = vmatpush.msra.mxu0 0.0
    %198 = vmatpush.msra.mxu0 0.0
    %199 = vmatpush.msra.mxu0 0.0
    %200 = vmatpush.msra.mxu0 0.0
    %201 = vmatpush.msra.mxu0 0.0
    %202 = vmatpush.msra.mxu0 0.0
    %203 = vmatpush.msra.mxu0 0.0
    %204 = vmatpush.msra.mxu0 0.0
    %205 = vmatpush.msra.mxu0 0.0
    %206 = vmatpush.msra.mxu0 0.0
    %207 = vmatpush.msra.mxu0 0.0
    %208 = vmatpush.msra.mxu0 %v54
    %209 = vmatpush.msra.mxu0 %v53
    %210 = vmatpush.msra.mxu0 %v52
    %211 = vmatpush.msra.mxu0 %v51
    %212 = vmatmul.f32.gmra.mxu0 %v194
    %v213 = vpop.f32.mrf.mxu0
    %v214 = vadd.f32 0.0, %v213
    %215 = vdwg.mxu0
    %v216 = vadd.f32 %v84, %v214
    %v217 = vtanh.pop %v216
    %219 = vrot.lane.b32.xlu0 %v192, 32
    %v220 = vpop.permute.xlu0 %219
    %v222 = vsel %vm87, %v217, %v220
    %v224 = vsel %vm114, %v222, 0
    %226 = vmatpush.msra.mxu0 0.0
    %227 = vmatpush.msra.mxu0 0.0
    %228 = vmatpush.msra.mxu0 0.0
    %229 = vmatpush.msra.mxu0 0.0
    %230 = vmatpush.msra.mxu0 0.0
    %231 = vmatpush.msra.mxu0 0.0
    %232 = vmatpush.msra.mxu0 0.0
    %233 = vmatpush.msra.mxu0 0.0
    %234 = vmatpush.msra.mxu0 %v67
    %235 = vmatpush.msra.mxu0 %v66
    %236 = vmatpush.msra.mxu0 %v65
    %237 = vmatpush.msra.mxu0 %v64
    %238 = vmatpush.msra.mxu0 %v63
    %239 = vmatpush.msra.mxu0 %v62
    %240 = vmatpush.msra.mxu0 %v61
    %241 = vmatpush.msra.mxu0 %v60
    %242 = vmatmul.f32.gmra.mxu0 %v224
    %v243 = vpop.f32.mrf.mxu0
    %v244 = vadd.f32 %v70, %v243
    %245 = vdwg.mxu0
    %v246 = vtanh.pop %v244
    %v248 = vsel %vm87, %v217, 0
    %250 = vmatpush.msra.mxu0 0.0
    %251 = vmatpush.msra.mxu0 0.0
    %252 = vmatpush.msra.mxu0 0.0
    %253 = vmatpush.msra.mxu0 0.0
    %254 = vmatpush.msra.mxu0 0.0
    %255 = vmatpush.msra.mxu0 0.0
    %256 = vmatpush.msra.mxu0 0.0
    %257 = vmatpush.msra.mxu0 0.0
    %258 = vmatpush.msra.mxu0 0.0
    %259 = vmatpush.msra.mxu0 0.0
    %260 = vmatpush.msra.mxu0 0.0
    %261 = vmatpush.msra.mxu0 0.0
    %262 = vmatpush.msra.mxu0 %v54
    %263 = vmatpush.msra.mxu0 %v53
    %264 = vmatpush.msra.mxu0 %v52
    %265 = vmatpush.msra.mxu0 %v51
    %266 = vmatmul.f32.gmra.mxu0 %v248
    %v267 = vpop.f32.mrf.mxu0
    %v268 = vadd.f32 0.0, %v267
    %269 = vdwg.mxu0
    %v270 = vadd.f32 %v86, %v268
    %v271 = vtanh.pop %v270
    %273 = vrot.lane.b32.xlu0 %v246, 32
    %v274 = vpop.permute.xlu0 %273
    %v276 = vsel %vm87, %v271, %v274
    %v278 = vsel %vm114, %v276, 0
    %280 = vmatpush.msra.mxu0 0.0
    %281 = vmatpush.msra.mxu0 0.0
    %282 = vmatpush.msra.mxu0 0.0
    %283 = vmatpush.msra.mxu0 0.0
    %284 = vmatpush.msra.mxu0 0.0
    %285 = vmatpush.msra.mxu0 0.0
    %286 = vmatpush.msra.mxu0 0.0
    %287 = vmatpush.msra.mxu0 0.0
    %288 = vmatpush.msra.mxu0 %v67
    %289 = vmatpush.msra.mxu0 %v66
    %290 = vmatpush.msra.mxu0 %v65
    %291 = vmatpush.msra.mxu0 %v64
    %292 = vmatpush.msra.mxu0 %v63
    %293 = vmatpush.msra.mxu0 %v62
    %294 = vmatpush.msra.mxu0 %v61
    %295 = vmatpush.msra.mxu0 %v60
    %296 = vmatmul.f32.gmra.mxu0 %v278
    %v297 = vpop.f32.mrf.mxu0
    %v298 = vadd.f32 %v70, %v297
    %299 = vdwg.mxu0
    %v300 = vtanh.pop %v298
    %v301 = vld [vmem:[%s2] sm:$0x3]
    %v303 = vsel %vm87, %v300, 0
    %305 = vmatpush.msra.mxu0 0.0
    %306 = vmatpush.msra.mxu0 0.0
    %307 = vmatpush.msra.mxu0 0.0
    %308 = vmatpush.msra.mxu0 0.0
    %309 = vmatpush.msra.mxu0 0.0
    %310 = vmatpush.msra.mxu0 0.0
    %311 = vmatpush.msra.mxu0 0.0
    %312 = vmatpush.msra.mxu0 0.0
    %313 = vmatpush.msra.mxu0 0.0
    %314 = vmatpush.msra.mxu0 0.0
    %315 = vmatpush.msra.mxu0 0.0
    %316 = vmatpush.msra.mxu0 0.0
    %317 = vmatpush.msra.mxu0 %v75
    %318 = vmatpush.msra.mxu0 %v74
    %319 = vmatpush.msra.mxu0 %v73
    %320 = vmatpush.msra.mxu0 %v72
    %321 = vmatmul.f32.gmra.mxu0 %v303
    %v322 = vpop.f32.mrf.mxu0
    %v323 = vadd.f32 %v78, %v322
    %324 = vdwg.mxu0
    %v325 = vadd.f32 %v301, %v323
    %vm326 = vcmask 25600
    %327 = vst.msk [vmem:[%s9] sm:$0x3] %vm326, %v325
    %v328 = vadd.f32 %v82, %v109
    %v329 = vtanh.pop %v328
    %v330 = vsel %vm87, %v329, 0.0
    %v332 = vsel %vm114, %v330, 0
    %334 = vmatpush.msra.mxu0 0.0
    %335 = vmatpush.msra.mxu0 0.0
    %336 = vmatpush.msra.mxu0 0.0
    %337 = vmatpush.msra.mxu0 0.0
    %338 = vmatpush.msra.mxu0 0.0
    %339 = vmatpush.msra.mxu0 0.0
    %340 = vmatpush.msra.mxu0 0.0
    %341 = vmatpush.msra.mxu0 0.0
    %342 = vmatpush.msra.mxu0 %v67
    %343 = vmatpush.msra.mxu0 %v66
    %344 = vmatpush.msra.mxu0 %v65
    %345 = vmatpush.msra.mxu0 %v64
    %346 = vmatpush.msra.mxu0 %v63
    %347 = vmatpush.msra.mxu0 %v62
    %348 = vmatpush.msra.mxu0 %v61
    %349 = vmatpush.msra.mxu0 %v60
    %350 = vmatmul.f32.gmra.mxu0 %v332
    %v351 = vpop.f32.mrf.mxu0
    %v352 = vadd.f32 %v70, %v351
    %353 = vdwg.mxu0
    %v354 = vtanh.pop %v352
    %v356 = vsel %vm87, %v329, 0
    %358 = vmatpush.msra.mxu0 0.0
    %359 = vmatpush.msra.mxu0 0.0
    %360 = vmatpush.msra.mxu0 0.0
    %361 = vmatpush.msra.mxu0 0.0
    %362 = vmatpush.msra.mxu0 0.0
    %363 = vmatpush.msra.mxu0 0.0
    %364 = vmatpush.msra.mxu0 0.0
    %365 = vmatpush.msra.mxu0 0.0
    %366 = vmatpush.msra.mxu0 0.0
    %367 = vmatpush.msra.mxu0 0.0
    %368 = vmatpush.msra.mxu0 0.0
    %369 = vmatpush.msra.mxu0 0.0
    %370 = vmatpush.msra.mxu0 %v54
    %371 = vmatpush.msra.mxu0 %v53
    %372 = vmatpush.msra.mxu0 %v52
    %373 = vmatpush.msra.mxu0 %v51
    %374 = vmatmul.f32.gmra.mxu0 %v356
    %v375 = vpop.f32.mrf.mxu0
    %v376 = vadd.f32 0.0, %v375
    %377 = vdwg.mxu0
    %v378 = vadd.f32 %v84, %v376
    %v379 = vtanh.pop %v378
    %381 = vrot.lane.b32.xlu0 %v354, 32
    %v382 = vpop.permute.xlu0 %381
    %v384 = vsel %vm87, %v379, %v382
    %v386 = vsel %vm114, %v384, 0
    %388 = vmatpush.msra.mxu0 0.0
    %389 = vmatpush.msra.mxu0 0.0
    %390 = vmatpush.msra.mxu0 0.0
    %391 = vmatpush.msra.mxu0 0.0
    %392 = vmatpush.msra.mxu0 0.0
    %393 = vmatpush.msra.mxu0 0.0
    %394 = vmatpush.msra.mxu0 0.0
    %395 = vmatpush.msra.mxu0 0.0
    %396 = vmatpush.msra.mxu0 %v67
    %397 = vmatpush.msra.mxu0 %v66
    %398 = vmatpush.msra.mxu0 %v65
    %399 = vmatpush.msra.mxu0 %v64
    %400 = vmatpush.msra.mxu0 %v63
    %401 = vmatpush.msra.mxu0 %v62
    %402 = vmatpush.msra.mxu0 %v61
    %403 = vmatpush.msra.mxu0 %v60
    %404 = vmatmul.f32.gmra.mxu0 %v386
    %v405 = vpop.f32.mrf.mxu0
    %v406 = vadd.f32 %v70, %v405
    %407 = vdwg.mxu0
    %v408 = vtanh.pop %v406
    %v410 = vsel %vm87, %v379, 0
    %412 = vmatpush.msra.mxu0 0.0
    %413 = vmatpush.msra.mxu0 0.0
    %414 = vmatpush.msra.mxu0 0.0
    %415 = vmatpush.msra.mxu0 0.0
    %416 = vmatpush.msra.mxu0 0.0
    %417 = vmatpush.msra.mxu0 0.0
    %418 = vmatpush.msra.mxu0 0.0
    %419 = vmatpush.msra.mxu0 0.0
    %420 = vmatpush.msra.mxu0 0.0
    %421 = vmatpush.msra.mxu0 0.0
    %422 = vmatpush.msra.mxu0 0.0
    %423 = vmatpush.msra.mxu0 0.0
    %424 = vmatpush.msra.mxu0 %v54
    %425 = vmatpush.msra.mxu0 %v53
    %426 = vmatpush.msra.mxu0 %v52
    %427 = vmatpush.msra.mxu0 %v51
    %428 = vmatmul.f32.gmra.mxu0 %v410
    %v429 = vpop.f32.mrf.mxu0
    %v430 = vadd.f32 0.0, %v429
    %431 = vdwg.mxu0
    %v432 = vadd.f32 %v86, %v430
    %v433 = vtanh.pop %v432
    %435 = vrot.lane.b32.xlu0 %v408, 32
    %v436 = vpop.permute.xlu0 %435
    %v438 = vsel %vm87, %v433, %v436
    %v440 = vsel %vm114, %v438, 0
    %442 = vmatpush.msra.mxu0 0.0
    %443 = vmatpush.msra.mxu0 0.0
    %444 = vmatpush.msra.mxu0 0.0
    %445 = vmatpush.msra.mxu0 0.0
    %446 = vmatpush.msra.mxu0 0.0
    %447 = vmatpush.msra.mxu0 0.0
    %448 = vmatpush.msra.mxu0 0.0
    %449 = vmatpush.msra.mxu0 0.0
    %450 = vmatpush.msra.mxu0 %v67
    %451 = vmatpush.msra.mxu0 %v66
    %452 = vmatpush.msra.mxu0 %v65
    %453 = vmatpush.msra.mxu0 %v64
    %454 = vmatpush.msra.mxu0 %v63
    %455 = vmatpush.msra.mxu0 %v62
    %456 = vmatpush.msra.mxu0 %v61
    %457 = vmatpush.msra.mxu0 %v60
    %458 = vmatmul.f32.gmra.mxu0 %v440
    %v459 = vpop.f32.mrf.mxu0
    %v460 = vadd.f32 %v70, %v459
    %461 = vdwg.mxu0
    %v462 = vtanh.pop %v460
    %s463 = scalar_lea.vmem %s1, 32
    %v464 = vld [vmem:[%s463] sm:$0xff]
    %466 = vrot.lane.b32.xlu0 %v433, 4
    %v467 = vpop.permute.xlu0 %466
    %vm469 = vcmask 31744
    %v470 = vsel %vm469, %v325, %v467
    %vm471 = vcmask 293888
    %v473 = vsel %vm471, %v470, 0
    %vm475 = vcmask 1043456
    %v477 = vsel %vm475, %v59, 0
    %479 = vmatpush.msra.mxu0 0.0
    %480 = vmatpush.msra.mxu0 0.0
    %481 = vmatpush.msra.mxu0 0.0
    %482 = vmatpush.msra.mxu0 0.0
    %483 = vmatpush.msra.mxu0 0.0
    %484 = vmatpush.msra.mxu0 0.0
    %485 = vmatpush.msra.mxu0 0.0
    %486 = vmatpush.msra.mxu0 0.0
    %487 = vmatpush.msra.mxu0 0.0
    %488 = vmatpush.msra.mxu0 0.0
    %489 = vmatpush.msra.mxu0 0.0
    %490 = vmatpush.msra.mxu0 %v477
    %491 = vmatpush.msra.mxu0 %v58
    %492 = vmatpush.msra.mxu0 %v57
    %493 = vmatpush.msra.mxu0 %v56
    %494 = vmatpush.msra.mxu0 %v55
    %495 = vmatmul.f32.gmra.mxu0 %v473
    %v496 = vpop.f32.mrf.mxu0
    %v497 = vadd.f32 0.0, %v496
    %498 = vdwg.mxu0
    %v499 = vadd.f32 %v464, %v497
    %v500 = vtanh.pop %v499
    %502 = vrot.lane.b32.xlu0 %v462, 32
    %v503 = vpop.permute.xlu0 %502
    %v505 = vsel %vm87, %v500, %v503
    %v507 = vsel %vm114, %v505, 0
    %509 = vmatpush.msra.mxu0 0.0
    %510 = vmatpush.msra.mxu0 0.0
    %511 = vmatpush.msra.mxu0 0.0
    %512 = vmatpush.msra.mxu0 0.0
    %513 = vmatpush.msra.mxu0 0.0
    %514 = vmatpush.msra.mxu0 0.0
    %515 = vmatpush.msra.mxu0 0.0
    %516 = vmatpush.msra.mxu0 0.0
    %517 = vmatpush.msra.mxu0 %v67
    %518 = vmatpush.msra.mxu0 %v66
    %519 = vmatpush.msra.mxu0 %v65
    %520 = vmatpush.msra.mxu0 %v64
    %521 = vmatpush.msra.mxu0 %v63
    %522 = vmatpush.msra.mxu0 %v62
    %523 = vmatpush.msra.mxu0 %v61
    %524 = vmatpush.msra.mxu0 %v60
    %525 = vmatmul.f32.gmra.mxu0 %v507
    %v526 = vpop.f32.mrf.mxu0
    %v527 = vadd.f32 %v70, %v526
    %528 = vdwg.mxu0
    %v529 = vtanh.pop %v527
    %v531 = vsel %vm87, %v529, 0
    %533 = vmatpush.msra.mxu0 0.0
    %534 = vmatpush.msra.mxu0 0.0
    %535 = vmatpush.msra.mxu0 0.0
    %536 = vmatpush.msra.mxu0 0.0
    %537 = vmatpush.msra.mxu0 0.0
    %538 = vmatpush.msra.mxu0 0.0
    %539 = vmatpush.msra.mxu0 0.0
    %540 = vmatpush.msra.mxu0 0.0
    %541 = vmatpush.msra.mxu0 0.0
    %542 = vmatpush.msra.mxu0 0.0
    %543 = vmatpush.msra.mxu0 0.0
    %544 = vmatpush.msra.mxu0 0.0
    %545 = vmatpush.msra.mxu0 %v75
    %546 = vmatpush.msra.mxu0 %v74
    %547 = vmatpush.msra.mxu0 %v73
    %548 = vmatpush.msra.mxu0 %v72
    %549 = vmatmul.f32.gmra.mxu0 %v531
    %v550 = vpop.f32.mrf.mxu0
    %v551 = vadd.f32 %v78, %v550
    %552 = vdwg.mxu0
    %v553 = vadd.f32 %v325, %v551
    %s554 = scalar_lea.vmem %s9, 2
    %555 = vst.msk [vmem:[%s554] sm:$0x3] %vm326, %v553
    %v556 = vadd.f32 %v84, %v109
    %v557 = vtanh.pop %v556
    %v558 = vsel %vm87, %v557, 0.0
    %v560 = vsel %vm114, %v558, 0
    %562 = vmatpush.msra.mxu0 0.0
    %563 = vmatpush.msra.mxu0 0.0
    %564 = vmatpush.msra.mxu0 0.0
    %565 = vmatpush.msra.mxu0 0.0
    %566 = vmatpush.msra.mxu0 0.0
    %567 = vmatpush.msra.mxu0 0.0
    %568 = vmatpush.msra.mxu0 0.0
    %569 = vmatpush.msra.mxu0 0.0
    %570 = vmatpush.msra.mxu0 %v67
    %571 = vmatpush.msra.mxu0 %v66
    %572 = vmatpush.msra.mxu0 %v65
    %573 = vmatpush.msra.mxu0 %v64
    %574 = vmatpush.msra.mxu0 %v63
    %575 = vmatpush.msra.mxu0 %v62
    %576 = vmatpush.msra.mxu0 %v61
    %577 = vmatpush.msra.mxu0 %v60
    %578 = vmatmul.f32.gmra.mxu0 %v560
    %v579 = vpop.f32.mrf.mxu0
    %v580 = vadd.f32 %v70, %v579
    %581 = vdwg.mxu0
    %v582 = vtanh.pop %v580
    %v584 = vsel %vm87, %v557, 0
    %586 = vmatpush.msra.mxu0 0.0
    %587 = vmatpush.msra.mxu0 0.0
    %588 = vmatpush.msra.mxu0 0.0
    %589 = vmatpush.msra.mxu0 0.0
    %590 = vmatpush.msra.mxu0 0.0
    %591 = vmatpush.msra.mxu0 0.0
    %592 = vmatpush.msra.mxu0 0.0
    %593 = vmatpush.msra.mxu0 0.0
    %594 = vmatpush.msra.mxu0 0.0
    %595 = vmatpush.msra.mxu0 0.0
    %596 = vmatpush.msra.mxu0 0.0
    %597 = vmatpush.msra.mxu0 0.0
    %598 = vmatpush.msra.mxu0 %v54
    %599 = vmatpush.msra.mxu0 %v53
    %600 = vmatpush.msra.mxu0 %v52
    %601 = vmatpush.msra.mxu0 %v51
    %602 = vmatmul.f32.gmra.mxu0 %v584
    %v603 = vpop.f32.mrf.mxu0
    %v604 = vadd.f32 0.0, %v603
    %605 = vdwg.mxu0
    %v606 = vadd.f32 %v86, %v604
    %v607 = vtanh.pop %v606
    %609 = vrot.lane.b32.xlu0 %v582, 32
    %v610 = vpop.permute.xlu0 %609
    %v612 = vsel %vm87, %v607, %v610
    %v614 = vsel %vm114, %v612, 0
    %616 = vmatpush.msra.mxu0 0.0
    %617 = vmatpush.msra.mxu0 0.0
    %618 = vmatpush.msra.mxu0 0.0
    %619 = vmatpush.msra.mxu0 0.0
    %620 = vmatpush.msra.mxu0 0.0
    %621 = vmatpush.msra.mxu0 0.0
    %622 = vmatpush.msra.mxu0 0.0
    %623 = vmatpush.msra.mxu0 0.0
    %624 = vmatpush.msra.mxu0 %v67
    %625 = vmatpush.msra.mxu0 %v66
    %626 = vmatpush.msra.mxu0 %v65
    %627 = vmatpush.msra.mxu0 %v64
    %628 = vmatpush.msra.mxu0 %v63
    %629 = vmatpush.msra.mxu0 %v62
    %630 = vmatpush.msra.mxu0 %v61
    %631 = vmatpush.msra.mxu0 %v60
    %632 = vmatmul.f32.gmra.mxu0 %v614
    %v633 = vpop.f32.mrf.mxu0
    %v634 = vadd.f32 %v70, %v633
    %635 = vdwg.mxu0
    %v636 = vtanh.pop %v634
    %s637 = scalar_lea.vmem %s1, 40
    %v638 = vld [vmem:[%s637] sm:$0xff]
    %640 = vrot.lane.b32.xlu0 %v607, 4
    %v641 = vpop.permute.xlu0 %640
    %v643 = vsel %vm469, %v325, %v641
    %v645 = vsel %vm471, %v643, 0
    %647 = vmatpush.msra.mxu0 0.0
    %648 = vmatpush.msra.mxu0 0.0
    %649 = vmatpush.msra.mxu0 0.0
    %650 = vmatpush.msra.mxu0 0.0
    %651 = vmatpush.msra.mxu0 0.0
    %652 = vmatpush.msra.mxu0 0.0
    %653 = vmatpush.msra.mxu0 0.0
    %654 = vmatpush.msra.mxu0 0.0
    %655 = vmatpush.msra.mxu0 0.0
    %656 = vmatpush.msra.mxu0 0.0
    %657 = vmatpush.msra.mxu0 0.0
    %658 = vmatpush.msra.mxu0 %v477
    %659 = vmatpush.msra.mxu0 %v58
    %660 = vmatpush.msra.mxu0 %v57
    %661 = vmatpush.msra.mxu0 %v56
    %662 = vmatpush.msra.mxu0 %v55
    %663 = vmatmul.f32.gmra.mxu0 %v645
    %v664 = vpop.f32.mrf.mxu0
    %v665 = vadd.f32 0.0, %v664
    %666 = vdwg.mxu0
    %v667 = vadd.f32 %v638, %v665
    %v668 = vtanh.pop %v667
    %670 = vrot.lane.b32.xlu0 %v636, 32
    %v671 = vpop.permute.xlu0 %670
    %v673 = vsel %vm87, %v668, %v671
    %v675 = vsel %vm114, %v673, 0
    %677 = vmatpush.msra.mxu0 0.0
    %678 = vmatpush.msra.mxu0 0.0
    %679 = vmatpush.msra.mxu0 0.0
    %680 = vmatpush.msra.mxu0 0.0
    %681 = vmatpush.msra.mxu0 0.0
    %682 = vmatpush.msra.mxu0 0.0
    %683 = vmatpush.msra.mxu0 0.0
    %684 = vmatpush.msra.mxu0 0.0
    %685 = vmatpush.msra.mxu0 %v67
    %686 = vmatpush.msra.mxu0 %v66
    %687 = vmatpush.msra.mxu0 %v65
    %688 = vmatpush.msra.mxu0 %v64
    %689 = vmatpush.msra.mxu0 %v63
    %690 = vmatpush.msra.mxu0 %v62
    %691 = vmatpush.msra.mxu0 %v61
    %692 = vmatpush.msra.mxu0 %v60
    %693 = vmatmul.f32.gmra.mxu0 %v675
    %v694 = vpop.f32.mrf.mxu0
    %v695 = vadd.f32 %v70, %v694
    %696 = vdwg.mxu0
    %v697 = vtanh.pop %v695
    %s698 = scalar_lea.vmem %s1, 48
    %v699 = vld [vmem:[%s698] sm:$0xff]
    %701 = vrot.lane.b32.xlu0 %v668, 4
    %v702 = vpop.permute.xlu0 %701
    %v704 = vsel %vm469, %v553, %v702
    %v706 = vsel %vm471, %v704, 0
    %708 = vmatpush.msra.mxu0 0.0
    %709 = vmatpush.msra.mxu0 0.0
    %710 = vmatpush.msra.mxu0 0.0
    %711 = vmatpush.msra.mxu0 0.0
    %712 = vmatpush.msra.mxu0 0.0
    %713 = vmatpush.msra.mxu0 0.0
    %714 = vmatpush.msra.mxu0 0.0
    %715 = vmatpush.msra.mxu0 0.0
    %716 = vmatpush.msra.mxu0 0.0
    %717 = vmatpush.msra.mxu0 0.0
    %718 = vmatpush.msra.mxu0 0.0
    %719 = vmatpush.msra.mxu0 %v477
    %720 = vmatpush.msra.mxu0 %v58
    %721 = vmatpush.msra.mxu0 %v57
    %722 = vmatpush.msra.mxu0 %v56
    %723 = vmatpush.msra.mxu0 %v55
    %724 = vmatmul.f32.gmra.mxu0 %v706
    %v725 = vpop.f32.mrf.mxu0
    %v726 = vadd.f32 0.0, %v725
    %727 = vdwg.mxu0
    %v728 = vadd.f32 %v699, %v726
    %v729 = vtanh.pop %v728
    %731 = vrot.lane.b32.xlu0 %v697, 32
    %v732 = vpop.permute.xlu0 %731
    %v734 = vsel %vm87, %v729, %v732
    %v736 = vsel %vm114, %v734, 0
    %738 = vmatpush.msra.mxu0 0.0
    %739 = vmatpush.msra.mxu0 0.0
    %740 = vmatpush.msra.mxu0 0.0
    %741 = vmatpush.msra.mxu0 0.0
    %742 = vmatpush.msra.mxu0 0.0
    %743 = vmatpush.msra.mxu0 0.0
    %744 = vmatpush.msra.mxu0 0.0
    %745 = vmatpush.msra.mxu0 0.0
    %746 = vmatpush.msra.mxu0 %v67
    %747 = vmatpush.msra.mxu0 %v66
    %748 = vmatpush.msra.mxu0 %v65
    %749 = vmatpush.msra.mxu0 %v64
    %750 = vmatpush.msra.mxu0 %v63
    %751 = vmatpush.msra.mxu0 %v62
    %752 = vmatpush.msra.mxu0 %v61
    %753 = vmatpush.msra.mxu0 %v60
    %754 = vmatmul.f32.gmra.mxu0 %v736
    %v755 = vpop.f32.mrf.mxu0
    %v756 = vadd.f32 %v70, %v755
    %757 = vdwg.mxu0
    %v758 = vtanh.pop %v756
    %v760 = vsel %vm87, %v758, 0
    %762 = vmatpush.msra.mxu0 0.0
    %763 = vmatpush.msra.mxu0 0.0
    %764 = vmatpush.msra.mxu0 0.0
    %765 = vmatpush.msra.mxu0 0.0
    %766 = vmatpush.msra.mxu0 0.0
    %767 = vmatpush.msra.mxu0 0.0
    %768 = vmatpush.msra.mxu0 0.0
    %769 = vmatpush.msra.mxu0 0.0
    %770 = vmatpush.msra.mxu0 0.0
    %771 = vmatpush.msra.mxu0 0.0
    %772 = vmatpush.msra.mxu0 0.0
    %773 = vmatpush.msra.mxu0 0.0
    %774 = vmatpush.msra.mxu0 %v75
    %775 = vmatpush.msra.mxu0 %v74
    %776 = vmatpush.msra.mxu0 %v73
    %777 = vmatpush.msra.mxu0 %v72
    %778 = vmatmul.f32.gmra.mxu0 %v760
    %v779 = vpop.f32.mrf.mxu0
    %v780 = vadd.f32 %v78, %v779
    %781 = vdwg.mxu0
    %v782 = vadd.f32 %v553, %v780
    %s783 = scalar_lea.vmem %s9, 4
    %784 = vst.msk [vmem:[%s783] sm:$0x3] %vm326, %v782
    %v785 = vadd.f32 %v86, %v109
    %v786 = vtanh.pop %v785
    %v787 = vsel %vm87, %v786, 0.0
    %v789 = vsel %vm114, %v787, 0
    %791 = vmatpush.msra.mxu0 0.0
    %792 = vmatpush.msra.mxu0 0.0
    %793 = vmatpush.msra.mxu0 0.0
    %794 = vmatpush.msra.mxu0 0.0
    %795 = vmatpush.msra.mxu0 0.0
    %796 = vmatpush.msra.mxu0 0.0
    %797 = vmatpush.msra.mxu0 0.0
    %798 = vmatpush.msra.mxu0 0.0
    %799 = vmatpush.msra.mxu0 %v67
    %800 = vmatpush.msra.mxu0 %v66
    %801 = vmatpush.msra.mxu0 %v65
    %802 = vmatpush.msra.mxu0 %v64
    %803 = vmatpush.msra.mxu0 %v63
    %804 = vmatpush.msra.mxu0 %v62
    %805 = vmatpush.msra.mxu0 %v61
    %806 = vmatpush.msra.mxu0 %v60
    %807 = vmatmul.f32.gmra.mxu0 %v789
    %v808 = vpop.f32.mrf.mxu0
    %v809 = vadd.f32 %v70, %v808
    %810 = vdwg.mxu0
    %v811 = vtanh.pop %v809
    %v812 = vld [vmem:[%s698] sm:$0xff]
    %814 = vrot.lane.b32.xlu0 %v786, 4
    %v815 = vpop.permute.xlu0 %814
    %v817 = vsel %vm469, %v325, %v815
    %v819 = vsel %vm471, %v817, 0
    %821 = vmatpush.msra.mxu0 0.0
    %822 = vmatpush.msra.mxu0 0.0
    %823 = vmatpush.msra.mxu0 0.0
    %824 = vmatpush.msra.mxu0 0.0
    %825 = vmatpush.msra.mxu0 0.0
    %826 = vmatpush.msra.mxu0 0.0
    %827 = vmatpush.msra.mxu0 0.0
    %828 = vmatpush.msra.mxu0 0.0
    %829 = vmatpush.msra.mxu0 0.0
    %830 = vmatpush.msra.mxu0 0.0
    %831 = vmatpush.msra.mxu0 0.0
    %832 = vmatpush.msra.mxu0 %v477
    %833 = vmatpush.msra.mxu0 %v58
    %834 = vmatpush.msra.mxu0 %v57
    %835 = vmatpush.msra.mxu0 %v56
    %836 = vmatpush.msra.mxu0 %v55
    %837 = vmatmul.f32.gmra.mxu0 %v819
    %v838 = vpop.f32.mrf.mxu0
    %v839 = vadd.f32 0.0, %v838
    %840 = vdwg.mxu0
    %v841 = vadd.f32 %v812, %v839
    %v842 = vtanh.pop %v841
    %844 = vrot.lane.b32.xlu0 %v811, 32
    %v845 = vpop.permute.xlu0 %844
    %v847 = vsel %vm87, %v842, %v845
    %v849 = vsel %vm114, %v847, 0
    %851 = vmatpush.msra.mxu0 0.0
    %852 = vmatpush.msra.mxu0 0.0
    %853 = vmatpush.msra.mxu0 0.0
    %854 = vmatpush.msra.mxu0 0.0
    %855 = vmatpush.msra.mxu0 0.0
    %856 = vmatpush.msra.mxu0 0.0
    %857 = vmatpush.msra.mxu0 0.0
    %858 = vmatpush.msra.mxu0 0.0
    %859 = vmatpush.msra.mxu0 %v67
    %860 = vmatpush.msra.mxu0 %v66
    %861 = vmatpush.msra.mxu0 %v65
    %862 = vmatpush.msra.mxu0 %v64
    %863 = vmatpush.msra.mxu0 %v63
    %864 = vmatpush.msra.mxu0 %v62
    %865 = vmatpush.msra.mxu0 %v61
    %866 = vmatpush.msra.mxu0 %v60
    %867 = vmatmul.f32.gmra.mxu0 %v849
    %v868 = vpop.f32.mrf.mxu0
    %v869 = vadd.f32 %v70, %v868
    %870 = vdwg.mxu0
    %v871 = vtanh.pop %v869
    %s872 = scalar_lea.vmem %s1, 56
    %v873 = vld [vmem:[%s872] sm:$0xff]
    %875 = vrot.lane.b32.xlu0 %v842, 4
    %v876 = vpop.permute.xlu0 %875
    %v878 = vsel %vm469, %v553, %v876
    %v880 = vsel %vm471, %v878, 0
    %882 = vmatpush.msra.mxu0 0.0
    %883 = vmatpush.msra.mxu0 0.0
    %884 = vmatpush.msra.mxu0 0.0
    %885 = vmatpush.msra.mxu0 0.0
    %886 = vmatpush.msra.mxu0 0.0
    %887 = vmatpush.msra.mxu0 0.0
    %888 = vmatpush.msra.mxu0 0.0
    %889 = vmatpush.msra.mxu0 0.0
    %890 = vmatpush.msra.mxu0 0.0
    %891 = vmatpush.msra.mxu0 0.0
    %892 = vmatpush.msra.mxu0 0.0
    %893 = vmatpush.msra.mxu0 %v477
    %894 = vmatpush.msra.mxu0 %v58
    %895 = vmatpush.msra.mxu0 %v57
    %896 = vmatpush.msra.mxu0 %v56
    %897 = vmatpush.msra.mxu0 %v55
    %898 = vmatmul.f32.gmra.mxu0 %v880
    %v899 = vpop.f32.mrf.mxu0
    %v900 = vadd.f32 0.0, %v899
    %901 = vdwg.mxu0
    %v902 = vadd.f32 %v873, %v900
    %v903 = vtanh.pop %v902
    %905 = vrot.lane.b32.xlu0 %v871, 32
    %v906 = vpop.permute.xlu0 %905
    %v908 = vsel %vm87, %v903, %v906
    %v910 = vsel %vm114, %v908, 0
    %912 = vmatpush.msra.mxu0 0.0
    %913 = vmatpush.msra.mxu0 0.0
    %914 = vmatpush.msra.mxu0 0.0
    %915 = vmatpush.msra.mxu0 0.0
    %916 = vmatpush.msra.mxu0 0.0
    %917 = vmatpush.msra.mxu0 0.0
    %918 = vmatpush.msra.mxu0 0.0
    %919 = vmatpush.msra.mxu0 0.0
    %920 = vmatpush.msra.mxu0 %v67
    %921 = vmatpush.msra.mxu0 %v66
    %922 = vmatpush.msra.mxu0 %v65
    %923 = vmatpush.msra.mxu0 %v64
    %924 = vmatpush.msra.mxu0 %v63
    %925 = vmatpush.msra.mxu0 %v62
    %926 = vmatpush.msra.mxu0 %v61
    %927 = vmatpush.msra.mxu0 %v60
    %928 = vmatmul.f32.gmra.mxu0 %v910
    %v929 = vpop.f32.mrf.mxu0
    %v930 = vadd.f32 %v70, %v929
    %931 = vdwg.mxu0
    %v932 = vtanh.pop %v930
    %s933 = scalar_lea.vmem %s1, 64
    %v934 = vld [vmem:[%s933] sm:$0xff]
    %936 = vrot.lane.b32.xlu0 %v903, 4
    %v937 = vpop.permute.xlu0 %936
    %v939 = vsel %vm469, %v782, %v937
    %v941 = vsel %vm471, %v939, 0
    %943 = vmatpush.msra.mxu0 0.0
    %944 = vmatpush.msra.mxu0 0.0
    %945 = vmatpush.msra.mxu0 0.0
    %946 = vmatpush.msra.mxu0 0.0
    %947 = vmatpush.msra.mxu0 0.0
    %948 = vmatpush.msra.mxu0 0.0
    %949 = vmatpush.msra.mxu0 0.0
    %950 = vmatpush.msra.mxu0 0.0
    %951 = vmatpush.msra.mxu0 0.0
    %952 = vmatpush.msra.mxu0 0.0
    %953 = vmatpush.msra.mxu0 0.0
    %954 = vmatpush.msra.mxu0 %v477
    %955 = vmatpush.msra.mxu0 %v58
    %956 = vmatpush.msra.mxu0 %v57
    %957 = vmatpush.msra.mxu0 %v56
    %958 = vmatpush.msra.mxu0 %v55
    %959 = vmatmul.f32.gmra.mxu0 %v941
    %v960 = vpop.f32.mrf.mxu0
    %v961 = vadd.f32 0.0, %v960
    %962 = vdwg.mxu0
    %v963 = vadd.f32 %v934, %v961
    %v964 = vtanh.pop %v963
    %966 = vrot.lane.b32.xlu0 %v932, 32
    %v967 = vpop.permute.xlu0 %966
    %v969 = vsel %vm87, %v964, %v967
    %v971 = vsel %vm114, %v969, 0
    %973 = vmatpush.msra.mxu0 0.0
    %974 = vmatpush.msra.mxu0 0.0
    %975 = vmatpush.msra.mxu0 0.0
    %976 = vmatpush.msra.mxu0 0.0
    %977 = vmatpush.msra.mxu0 0.0
    %978 = vmatpush.msra.mxu0 0.0
    %979 = vmatpush.msra.mxu0 0.0
    %980 = vmatpush.msra.mxu0 0.0
    %981 = vmatpush.msra.mxu0 %v67
    %982 = vmatpush.msra.mxu0 %v66
    %983 = vmatpush.msra.mxu0 %v65
    %984 = vmatpush.msra.mxu0 %v64
    %985 = vmatpush.msra.mxu0 %v63
    %986 = vmatpush.msra.mxu0 %v62
    %987 = vmatpush.msra.mxu0 %v61
    %988 = vmatpush.msra.mxu0 %v60
    %989 = vmatmul.f32.gmra.mxu0 %v971
    %v990 = vpop.f32.mrf.mxu0
    %v991 = vadd.f32 %v70, %v990
    %992 = vdwg.mxu0
    %v993 = vtanh.pop %v991
    %v995 = vsel %vm87, %v993, 0
    %997 = vmatpush.msra.mxu0 0.0
    %998 = vmatpush.msra.mxu0 0.0
    %999 = vmatpush.msra.mxu0 0.0
    %1000 = vmatpush.msra.mxu0 0.0
    %1001 = vmatpush.msra.mxu0 0.0
    %1002 = vmatpush.msra.mxu0 0.0
    %1003 = vmatpush.msra.mxu0 0.0
    %1004 = vmatpush.msra.mxu0 0.0
    %1005 = vmatpush.msra.mxu0 0.0
    %1006 = vmatpush.msra.mxu0 0.0
    %1007 = vmatpush.msra.mxu0 0.0
    %1008 = vmatpush.msra.mxu0 0.0
    %1009 = vmatpush.msra.mxu0 %v75
    %1010 = vmatpush.msra.mxu0 %v74
    %1011 = vmatpush.msra.mxu0 %v73
    %1012 = vmatpush.msra.mxu0 %v72
    %1013 = vmatmul.f32.gmra.mxu0 %v995
    %v1014 = vpop.f32.mrf.mxu0
    %v1015 = vadd.f32 %v78, %v1014
    %1016 = vdwg.mxu0
    %v1017 = vadd.f32 %v782, %v1015
    %s1018 = scalar_lea.vmem %s9, 6
    %1019 = vst.msk [vmem:[%s1018] sm:$0x3] %vm326, %v1017
    %v1020 = vld [vmem:[%s463] sm:$0xff]
    %v1021 = vsel %vm469, %v325, 0.0
    %v1023 = vsel %vm471, %v1021, 0
    %1025 = vmatpush.msra.mxu0 0.0
    %1026 = vmatpush.msra.mxu0 0.0
    %1027 = vmatpush.msra.mxu0 0.0
    %1028 = vmatpush.msra.mxu0 0.0
    %1029 = vmatpush.msra.mxu0 0.0
    %1030 = vmatpush.msra.mxu0 0.0
    %1031 = vmatpush.msra.mxu0 0.0
    %1032 = vmatpush.msra.mxu0 0.0
    %1033 = vmatpush.msra.mxu0 0.0
    %1034 = vmatpush.msra.mxu0 0.0
    %1035 = vmatpush.msra.mxu0 0.0
    %1036 = vmatpush.msra.mxu0 %v477
    %1037 = vmatpush.msra.mxu0 %v58
    %1038 = vmatpush.msra.mxu0 %v57
    %1039 = vmatpush.msra.mxu0 %v56
    %1040 = vmatpush.msra.mxu0 %v55
    %1041 = vmatmul.f32.gmra.mxu0 %v1023
    %v1042 = vpop.f32.mrf.mxu0
    %v1043 = vadd.f32 0.0, %v1042
    %1044 = vdwg.mxu0
    %v1045 = vadd.f32 %v1020, %v1043
    %v1046 = vtanh.pop %v1045
    %v1047 = vsel %vm87, %v1046, 0.0
    %v1049 = vsel %vm114, %v1047, 0
    %1051 = vmatpush.msra.mxu0 0.0
    %1052 = vmatpush.msra.mxu0 0.0
    %1053 = vmatpush.msra.mxu0 0.0
    %1054 = vmatpush.msra.mxu0 0.0
    %1055 = vmatpush.msra.mxu0 0.0
    %1056 = vmatpush.msra.mxu0 0.0
    %1057 = vmatpush.msra.mxu0 0.0
    %1058 = vmatpush.msra.mxu0 0.0
    %1059 = vmatpush.msra.mxu0 %v67
    %1060 = vmatpush.msra.mxu0 %v66
    %1061 = vmatpush.msra.mxu0 %v65
    %1062 = vmatpush.msra.mxu0 %v64
    %1063 = vmatpush.msra.mxu0 %v63
    %1064 = vmatpush.msra.mxu0 %v62
    %1065 = vmatpush.msra.mxu0 %v61
    %1066 = vmatpush.msra.mxu0 %v60
    %1067 = vmatmul.f32.gmra.mxu0 %v1049
    %v1068 = vpop.f32.mrf.mxu0
    %v1069 = vadd.f32 %v70, %v1068
    %1070 = vdwg.mxu0
    %v1071 = vtanh.pop %v1069
    %v1072 = vld [vmem:[%s637] sm:$0xff]
    %1074 = vrot.lane.b32.xlu0 %v1046, 4
    %v1075 = vpop.permute.xlu0 %1074
    %v1077 = vsel %vm469, %v553, %v1075
    %v1079 = vsel %vm471, %v1077, 0
    %1081 = vmatpush.msra.mxu0 0.0
    %1082 = vmatpush.msra.mxu0 0.0
    %1083 = vmatpush.msra.mxu0 0.0
    %1084 = vmatpush.msra.mxu0 0.0
    %1085 = vmatpush.msra.mxu0 0.0
    %1086 = vmatpush.msra.mxu0 0.0
    %1087 = vmatpush.msra.mxu0 0.0
    %1088 = vmatpush.msra.mxu0 0.0
    %1089 = vmatpush.msra.mxu0 0.0
    %1090 = vmatpush.msra.mxu0 0.0
    %1091 = vmatpush.msra.mxu0 0.0
    %1092 = vmatpush.msra.mxu0 %v477
    %1093 = vmatpush.msra.mxu0 %v58
    %1094 = vmatpush.msra.mxu0 %v57
    %1095 = vmatpush.msra.mxu0 %v56
    %1096 = vmatpush.msra.mxu0 %v55
    %1097 = vmatmul.f32.gmra.mxu0 %v1079
    %v1098 = vpop.f32.mrf.mxu0
    %v1099 = vadd.f32 0.0, %v1098
    %1100 = vdwg.mxu0
    %v1101 = vadd.f32 %v1072, %v1099
    %v1102 = vtanh.pop %v1101
    %1104 = vrot.lane.b32.xlu0 %v1071, 32
    %v1105 = vpop.permute.xlu0 %1104
    %v1107 = vsel %vm87, %v1102, %v1105
    %v1109 = vsel %vm114, %v1107, 0
    %1111 = vmatpush.msra.mxu0 0.0
    %1112 = vmatpush.msra.mxu0 0.0
    %1113 = vmatpush.msra.mxu0 0.0
    %1114 = vmatpush.msra.mxu0 0.0
    %1115 = vmatpush.msra.mxu0 0.0
    %1116 = vmatpush.msra.mxu0 0.0
    %1117 = vmatpush.msra.mxu0 0.0
    %1118 = vmatpush.msra.mxu0 0.0
    %1119 = vmatpush.msra.mxu0 %v67
    %1120 = vmatpush.msra.mxu0 %v66
    %1121 = vmatpush.msra.mxu0 %v65
    %1122 = vmatpush.msra.mxu0 %v64
    %1123 = vmatpush.msra.mxu0 %v63
    %1124 = vmatpush.msra.mxu0 %v62
    %1125 = vmatpush.msra.mxu0 %v61
    %1126 = vmatpush.msra.mxu0 %v60
    %1127 = vmatmul.f32.gmra.mxu0 %v1109
    %v1128 = vpop.f32.mrf.mxu0
    %v1129 = vadd.f32 %v70, %v1128
    %1130 = vdwg.mxu0
    %v1131 = vtanh.pop %v1129
    %v1132 = vld [vmem:[%s698] sm:$0xff]
    %1134 = vrot.lane.b32.xlu0 %v1102, 4
    %v1135 = vpop.permute.xlu0 %1134
    %v1137 = vsel %vm469, %v782, %v1135
    %v1139 = vsel %vm471, %v1137, 0
    %1141 = vmatpush.msra.mxu0 0.0
    %1142 = vmatpush.msra.mxu0 0.0
    %1143 = vmatpush.msra.mxu0 0.0
    %1144 = vmatpush.msra.mxu0 0.0
    %1145 = vmatpush.msra.mxu0 0.0
    %1146 = vmatpush.msra.mxu0 0.0
    %1147 = vmatpush.msra.mxu0 0.0
    %1148 = vmatpush.msra.mxu0 0.0
    %1149 = vmatpush.msra.mxu0 0.0
    %1150 = vmatpush.msra.mxu0 0.0
    %1151 = vmatpush.msra.mxu0 0.0
    %1152 = vmatpush.msra.mxu0 %v477
    %1153 = vmatpush.msra.mxu0 %v58
    %1154 = vmatpush.msra.mxu0 %v57
    %1155 = vmatpush.msra.mxu0 %v56
    %1156 = vmatpush.msra.mxu0 %v55
    %1157 = vmatmul.f32.gmra.mxu0 %v1139
    %v1158 = vpop.f32.mrf.mxu0
    %v1159 = vadd.f32 0.0, %v1158
    %1160 = vdwg.mxu0
    %v1161 = vadd.f32 %v1132, %v1159
    %v1162 = vtanh.pop %v1161
    %1164 = vrot.lane.b32.xlu0 %v1131, 32
    %v1165 = vpop.permute.xlu0 %1164
    %v1167 = vsel %vm87, %v1162, %v1165
    %v1169 = vsel %vm114, %v1167, 0
    %1171 = vmatpush.msra.mxu0 0.0
    %1172 = vmatpush.msra.mxu0 0.0
    %1173 = vmatpush.msra.mxu0 0.0
    %1174 = vmatpush.msra.mxu0 0.0
    %1175 = vmatpush.msra.mxu0 0.0
    %1176 = vmatpush.msra.mxu0 0.0
    %1177 = vmatpush.msra.mxu0 0.0
    %1178 = vmatpush.msra.mxu0 0.0
    %1179 = vmatpush.msra.mxu0 %v67
    %1180 = vmatpush.msra.mxu0 %v66
    %1181 = vmatpush.msra.mxu0 %v65
    %1182 = vmatpush.msra.mxu0 %v64
    %1183 = vmatpush.msra.mxu0 %v63
    %1184 = vmatpush.msra.mxu0 %v62
    %1185 = vmatpush.msra.mxu0 %v61
    %1186 = vmatpush.msra.mxu0 %v60
    %1187 = vmatmul.f32.gmra.mxu0 %v1169
    %v1188 = vpop.f32.mrf.mxu0
    %v1189 = vadd.f32 %v70, %v1188
    %1190 = vdwg.mxu0
    %v1191 = vtanh.pop %v1189
    %v1192 = vsel %vm469, %v553, 0.0
    %v1194 = vsel %vm471, %v1192, 0
    %1196 = vmatpush.msra.mxu0 0.0
    %1197 = vmatpush.msra.mxu0 0.0
    %1198 = vmatpush.msra.mxu0 0.0
    %1199 = vmatpush.msra.mxu0 0.0
    %1200 = vmatpush.msra.mxu0 0.0
    %1201 = vmatpush.msra.mxu0 0.0
    %1202 = vmatpush.msra.mxu0 0.0
    %1203 = vmatpush.msra.mxu0 0.0
    %1204 = vmatpush.msra.mxu0 0.0
    %1205 = vmatpush.msra.mxu0 0.0
    %1206 = vmatpush.msra.mxu0 0.0
    %1207 = vmatpush.msra.mxu0 %v477
    %1208 = vmatpush.msra.mxu0 %v58
    %1209 = vmatpush.msra.mxu0 %v57
    %1210 = vmatpush.msra.mxu0 %v56
    %1211 = vmatpush.msra.mxu0 %v55
    %1212 = vmatmul.f32.gmra.mxu0 %v1194
    %v1213 = vpop.f32.mrf.mxu0
    %v1214 = vadd.f32 0.0, %v1213
    %1215 = vdwg.mxu0
    %v1216 = vadd.f32 %v1072, %v1214
    %v1217 = vtanh.pop %v1216
    %v1218 = vsel %vm87, %v1217, 0.0
    %v1220 = vsel %vm114, %v1218, 0
    %1222 = vmatpush.msra.mxu0 0.0
    %1223 = vmatpush.msra.mxu0 0.0
    %1224 = vmatpush.msra.mxu0 0.0
    %1225 = vmatpush.msra.mxu0 0.0
    %1226 = vmatpush.msra.mxu0 0.0
    %1227 = vmatpush.msra.mxu0 0.0
    %1228 = vmatpush.msra.mxu0 0.0
    %1229 = vmatpush.msra.mxu0 0.0
    %1230 = vmatpush.msra.mxu0 %v67
    %1231 = vmatpush.msra.mxu0 %v66
    %1232 = vmatpush.msra.mxu0 %v65
    %1233 = vmatpush.msra.mxu0 %v64
    %1234 = vmatpush.msra.mxu0 %v63
    %1235 = vmatpush.msra.mxu0 %v62
    %1236 = vmatpush.msra.mxu0 %v61
    %1237 = vmatpush.msra.mxu0 %v60
    %1238 = vmatmul.f32.gmra.mxu0 %v1220
    %v1239 = vpop.f32.mrf.mxu0
    %v1240 = vadd.f32 %v70, %v1239
    %1241 = vdwg.mxu0
    %v1242 = vtanh.pop %v1240
    %1244 = vrot.lane.b32.xlu0 %v1217, 4
    %v1245 = vpop.permute.xlu0 %1244
    %v1247 = vsel %vm469, %v782, %v1245
    %v1249 = vsel %vm471, %v1247, 0
    %1251 = vmatpush.msra.mxu0 0.0
    %1252 = vmatpush.msra.mxu0 0.0
    %1253 = vmatpush.msra.mxu0 0.0
    %1254 = vmatpush.msra.mxu0 0.0
    %1255 = vmatpush.msra.mxu0 0.0
    %1256 = vmatpush.msra.mxu0 0.0
    %1257 = vmatpush.msra.mxu0 0.0
    %1258 = vmatpush.msra.mxu0 0.0
    %1259 = vmatpush.msra.mxu0 0.0
    %1260 = vmatpush.msra.mxu0 0.0
    %1261 = vmatpush.msra.mxu0 0.0
    %1262 = vmatpush.msra.mxu0 %v477
    %1263 = vmatpush.msra.mxu0 %v58
    %1264 = vmatpush.msra.mxu0 %v57
    %1265 = vmatpush.msra.mxu0 %v56
    %1266 = vmatpush.msra.mxu0 %v55
    %1267 = vmatmul.f32.gmra.mxu0 %v1249
    %v1268 = vpop.f32.mrf.mxu0
    %v1269 = vadd.f32 0.0, %v1268
    %1270 = vdwg.mxu0
    %v1271 = vadd.f32 %v1132, %v1269
    %v1272 = vtanh.pop %v1271
    %1274 = vrot.lane.b32.xlu0 %v1242, 32
    %v1275 = vpop.permute.xlu0 %1274
    %v1277 = vsel %vm87, %v1272, %v1275
    %v1279 = vsel %vm114, %v1277, 0
    %1281 = vmatpush.msra.mxu0 0.0
    %1282 = vmatpush.msra.mxu0 0.0
    %1283 = vmatpush.msra.mxu0 0.0
    %1284 = vmatpush.msra.mxu0 0.0
    %1285 = vmatpush.msra.mxu0 0.0
    %1286 = vmatpush.msra.mxu0 0.0
    %1287 = vmatpush.msra.mxu0 0.0
    %1288 = vmatpush.msra.mxu0 0.0
    %1289 = vmatpush.msra.mxu0 %v67
    %1290 = vmatpush.msra.mxu0 %v66
    %1291 = vmatpush.msra.mxu0 %v65
    %1292 = vmatpush.msra.mxu0 %v64
    %1293 = vmatpush.msra.mxu0 %v63
    %1294 = vmatpush.msra.mxu0 %v62
    %1295 = vmatpush.msra.mxu0 %v61
    %1296 = vmatpush.msra.mxu0 %v60
    %1297 = vmatmul.f32.gmra.mxu0 %v1279
    %v1298 = vpop.f32.mrf.mxu0
    %v1299 = vadd.f32 %v70, %v1298
    %1300 = vdwg.mxu0
    %v1301 = vtanh.pop %v1299
    %v1302 = vsel %vm469, %v782, 0.0
    %v1304 = vsel %vm471, %v1302, 0
    %1306 = vmatpush.msra.mxu0 0.0
    %1307 = vmatpush.msra.mxu0 0.0
    %1308 = vmatpush.msra.mxu0 0.0
    %1309 = vmatpush.msra.mxu0 0.0
    %1310 = vmatpush.msra.mxu0 0.0
    %1311 = vmatpush.msra.mxu0 0.0
    %1312 = vmatpush.msra.mxu0 0.0
    %1313 = vmatpush.msra.mxu0 0.0
    %1314 = vmatpush.msra.mxu0 0.0
    %1315 = vmatpush.msra.mxu0 0.0
    %1316 = vmatpush.msra.mxu0 0.0
    %1317 = vmatpush.msra.mxu0 %v477
    %1318 = vmatpush.msra.mxu0 %v58
    %1319 = vmatpush.msra.mxu0 %v57
    %1320 = vmatpush.msra.mxu0 %v56
    %1321 = vmatpush.msra.mxu0 %v55
    %1322 = vmatmul.f32.gmra.mxu0 %v1304
    %v1323 = vpop.f32.mrf.mxu0
    %v1324 = vadd.f32 0.0, %v1323
    %1325 = vdwg.mxu0
    %v1326 = vadd.f32 %v1132, %v1324
    %v1327 = vtanh.pop %v1326
    %v1328 = vsel %vm87, %v1327, 0.0
    %v1330 = vsel %vm114, %v1328, 0
    %1332 = vmatpush.msra.mxu0 0.0
    %1333 = vmatpush.msra.mxu0 0.0
    %1334 = vmatpush.msra.mxu0 0.0
    %1335 = vmatpush.msra.mxu0 0.0
    %1336 = vmatpush.msra.mxu0 0.0
    %1337 = vmatpush.msra.mxu0 0.0
    %1338 = vmatpush.msra.mxu0 0.0
    %1339 = vmatpush.msra.mxu0 0.0
    %1340 = vmatpush.msra.mxu0 %v67
    %1341 = vmatpush.msra.mxu0 %v66
    %1342 = vmatpush.msra.mxu0 %v65
    %1343 = vmatpush.msra.mxu0 %v64
    %1344 = vmatpush.msra.mxu0 %v63
    %1345 = vmatpush.msra.mxu0 %v62
    %1346 = vmatpush.msra.mxu0 %v61
    %1347 = vmatpush.msra.mxu0 %v60
    %1348 = vmatmul.f32.gmra.mxu0 %v1330
    %v1349 = vpop.f32.mrf.mxu0
    %v1350 = vadd.f32 %v70, %v1349
    %1351 = vdwg.mxu0
    %v1352 = vtanh.pop %v1350
    %v1354 = vrot.slane %v1272, 6
    %v1357 = vrot.slane %v1327, 4
    %vm1359 = vcmask 1041408
    %v1360 = vsel %vm1359, %v1162, %v1354
    %v1361 = vsel %vm475, %v1360, %v1357
    %vm1362 = vcmask 1045504
    %v1363 = vsel %vm1362, %v1361, 0.0
    %v1365 = vrot.slane %v1301, 6
    %v1368 = vrot.slane %v1352, 4
    %v1370 = vsel %vm1359, %v1191, %v1365
    %v1371 = vsel %vm475, %v1370, %v1368
    %v1372 = vsel %vm1362, %v1371, 0.0
    loop: start=4, step=1, limit=12
    $region42: #{tpu_custom_call.1} parent=1 // loop_pre_header
      _
    $region43: #{tpu_custom_call.1} parent=1 // loop_header
      %s1374 = sphi 4, %s1378
      %p1375 = scmp.ge.s32.totalorder %s1374, 12
      %v1379 = vphi %v1363, %v1487
      %v1380 = vphi %v1372, %v1490
      %v1381 = vphi %v1017, %v1480
      %v1382 = vphi %v964, %v1427
      %v1383 = vphi %v993, %v1456
    $region44: #{tpu_custom_call.1} parent=1 // loop_header_branch
      %1377 = sbr.rel (%p1375) target = $region48
    $region45: #{tpu_custom_call.1} parent=1 // loop_body
      %s1384 = sadd.s32 %s1374, 3
      %s1385 = smul.u32 %s1384, 8
      %s1386 = scalar_lea.vmem %s1, %s1385
      %v1387 = vld [vmem:[%s1386] sm:$0xff]
      %v1389 = vrot.slane %v1381, 6
      %v1391 = vrot.slane %v1381, 4
      %v1393 = vrot.slane %v1381, 2
      %v1395 = vsel %vm1359, %v1381, %v1389
      %v1396 = vsel %vm475, %v1395, %v1391
      %v1397 = vsel %vm1362, %v1396, %v1393
      %1399 = vrot.lane.b32.xlu0 %v1379, 4
      %v1400 = vpop.permute.xlu0 %1399
      %v1402 = vsel %vm469, %v1397, %v1400
      %v1404 = vsel %vm471, %v1402, 0
      %1406 = vmatpush.msra.mxu0 0.0
      %1407 = vmatpush.msra.mxu0 0.0
      %1408 = vmatpush.msra.mxu0 0.0
      %1409 = vmatpush.msra.mxu0 0.0
      %1410 = vmatpush.msra.mxu0 0.0
      %1411 = vmatpush.msra.mxu0 0.0
      %1412 = vmatpush.msra.mxu0 0.0
      %1413 = vmatpush.msra.mxu0 0.0
      %1414 = vmatpush.msra.mxu0 0.0
      %1415 = vmatpush.msra.mxu0 0.0
      %1416 = vmatpush.msra.mxu0 0.0
      %1417 = vmatpush.msra.mxu0 %v477
      %1418 = vmatpush.msra.mxu0 %v58
      %1419 = vmatpush.msra.mxu0 %v57
      %1420 = vmatpush.msra.mxu0 %v56
      %1421 = vmatpush.msra.mxu0 %v55
      %1422 = vmatmul.f32.gmra.mxu0 %v1404
      %v1423 = vpop.f32.mrf.mxu0
      %v1424 = vadd.f32 0.0, %v1423
      %1425 = vdwg.mxu0
      %v1426 = vadd.f32 %v1387, %v1424
      %v1427 = vtanh.pop %v1426
      %1429 = vrot.lane.b32.xlu0 %v1380, 32
      %v1430 = vpop.permute.xlu0 %1429
      %v1432 = vsel %vm87, %v1427, %v1430
      %v1434 = vsel %vm114, %v1432, 0
      %1436 = vmatpush.msra.mxu0 0.0
      %1437 = vmatpush.msra.mxu0 0.0
      %1438 = vmatpush.msra.mxu0 0.0
      %1439 = vmatpush.msra.mxu0 0.0
      %1440 = vmatpush.msra.mxu0 0.0
      %1441 = vmatpush.msra.mxu0 0.0
      %1442 = vmatpush.msra.mxu0 0.0
      %1443 = vmatpush.msra.mxu0 0.0
      %1444 = vmatpush.msra.mxu0 %v67
      %1445 = vmatpush.msra.mxu0 %v66
      %1446 = vmatpush.msra.mxu0 %v65
      %1447 = vmatpush.msra.mxu0 %v64
      %1448 = vmatpush.msra.mxu0 %v63
      %1449 = vmatpush.msra.mxu0 %v62
      %1450 = vmatpush.msra.mxu0 %v61
      %1451 = vmatpush.msra.mxu0 %v60
      %1452 = vmatmul.f32.gmra.mxu0 %v1434
      %v1453 = vpop.f32.mrf.mxu0
      %v1454 = vadd.f32 %v70, %v1453
      %1455 = vdwg.mxu0
      %v1456 = vtanh.pop %v1454
      %v1458 = vsel %vm87, %v1456, 0
      %1460 = vmatpush.msra.mxu0 0.0
      %1461 = vmatpush.msra.mxu0 0.0
      %1462 = vmatpush.msra.mxu0 0.0
      %1463 = vmatpush.msra.mxu0 0.0
      %1464 = vmatpush.msra.mxu0 0.0
      %1465 = vmatpush.msra.mxu0 0.0
      %1466 = vmatpush.msra.mxu0 0.0
      %1467 = vmatpush.msra.mxu0 0.0
      %1468 = vmatpush.msra.mxu0 0.0
      %1469 = vmatpush.msra.mxu0 0.0
      %1470 = vmatpush.msra.mxu0 0.0
      %1471 = vmatpush.msra.mxu0 0.0
      %1472 = vmatpush.msra.mxu0 %v75
      %1473 = vmatpush.msra.mxu0 %v74
      %1474 = vmatpush.msra.mxu0 %v73
      %1475 = vmatpush.msra.mxu0 %v72
      %1476 = vmatmul.f32.gmra.mxu0 %v1458
      %v1477 = vpop.f32.mrf.mxu0
      %v1478 = vadd.f32 %v78, %v1477
      %1479 = vdwg.mxu0
      %v1480 = vadd.f32 %v1381, %v1478
      %s1481 = smul.u32 %s1374, 2
      %s1482 = scalar_lea.vmem %s9, %s1481
      %1483 = vst.msk [vmem:[%s1482] sm:$0x3] %vm326, %v1480
      %v1485 = vrot.slane %v1427, 2
      %v1487 = vsel %vm1362, %v1485, 0.0
      %v1488 = vrot.slane %v1456, 2
      %v1490 = vsel %vm1362, %v1488, 0.0
    $region46: #{tpu_custom_call.1} parent=1 // loop_footer
      %s1378 = sadd.s32 1, %s1374
    $region47: #{tpu_custom_call.1} parent=1 // loop_footer_branch
      %1373 = sbr.rel target = $region43
    $region48: #{tpu_custom_call.1} parent=1 // loop_exit
      _
    %vm1491 = vcmask 254976
    %1492 = vst.msk [vmem:[#allocation5] sm:$0x3] %vm1491, %v1382
    %s1493 = scalar_lea.vmem [#allocation5], 2
    %1494 = vst.msk [vmem:[%s1493] sm:$0x3] %vm1491, %v1383
    // Predicated region
    $region49: #{tpu_custom_call.1} parent=1 // pred_check
      _
    $region50: #{tpu_custom_call.1} parent=1 // pred_check_branch
      %1496 = sbr.rel (0) target = $region52
    $region51: #{tpu_custom_call.1} parent=1 // pred_region
      _
    $region52: #{tpu_custom_call.1} parent=1 // pred_fallthru
      _
    // Predicated region
    $region53: #{tpu_custom_call.1} parent=1 // pred_check
      _
    $region54: #{tpu_custom_call.1} parent=1 // pred_check_branch
      %1498 = sbr.rel (0) target = $region56
    $region55: #{tpu_custom_call.1} parent=1 // pred_region
      %1500 = vsyncadd [#allocation4], 0
      %s1501 = sshll.u32 [#allocation5], 4
      %s1502 = int_to_ptr.vmem [resolvable:$true] %s1501
      %s1503 = sshll.u32 %s10, 4
      %s1504 = int_to_ptr.hbm [resolvable:$true] %s1503
      %1509 = dma.vmem_to_hbm [thread:$0]  %s1502, 64, %s1504, [#allocation4], 32, 32, 2
    $region56: #{tpu_custom_call.1} parent=1 // pred_fallthru
      _
    // Predicated region
    $region57: #{tpu_custom_call.1} parent=1 // pred_check
      _
    $region58: #{tpu_custom_call.1} parent=1 // pred_check_branch
      %1511 = sbr.rel (0) target = $region60
    $region59: #{tpu_custom_call.1} parent=1 // pred_region
      _
    $region60: #{tpu_custom_call.1} parent=1 // pred_fallthru
      _
    // Predicated region
    $region61: #{tpu_custom_call.1} parent=1 // pred_check
      _
    $region62: #{tpu_custom_call.1} parent=1 // pred_check_branch
      %1513 = sbr.rel (0) target = $region64
    $region63: #{tpu_custom_call.1} parent=1 // pred_region
      %1515 = dma.done [#allocation4], 64
    $region64: #{tpu_custom_call.1} parent=1 // pred_fallthru
      _
    %1516 = vsyncpa [#allocation3], 1
    %1517 = vsyncpa [#allocation4], 1

</llo_original>
